<compile_context>
chip_gen: v7x
topology: tpu7x:2x2x1
jax: 0.10.0
libtpu: 0.0.40
codegen_flags: <defaults>
</compile_context>

<pallas_src>
import jax
import jax.numpy as jnp
from jax.experimental import pallas as pl
from jax.experimental.pallas import tpu as pltpu

HIDDEN = 512


def _round_up(x: int, m: int) -> int:
    return (x + m - 1) // m * m


def _qcritic_kernel(sa_ref,
                    w1_ref, b1_ref,
                    w2_ref, b2_ref,
                    w3_ref, b3_ref,
                    w4_ref, b4_ref,
                    out_ref):
    """One grid step == (one critic net) x (one batch tile).

    sa_ref : (bt, S+A)            f32
    w*_ref : (1, in, out)         bf16   (current net's weights)
    b*_ref : (1, 1, out)          f32
    out_ref: (1, bt, n_quantiles) f32
    """
    x = sa_ref[...].astype(jnp.bfloat16)                        # (bt, S+A) bf16

    h = jnp.dot(x, w1_ref[0], preferred_element_type=jnp.float32) + b1_ref[0]
    h = jnp.maximum(h, 0.0)                                      # (bt, 512) f32

    h = jnp.dot(h.astype(jnp.bfloat16), w2_ref[0],
                preferred_element_type=jnp.float32) + b2_ref[0]
    h = jnp.maximum(h, 0.0)                                      # (bt, 512)

    h = jnp.dot(h.astype(jnp.bfloat16), w3_ref[0],
                preferred_element_type=jnp.float32) + b3_ref[0]
    h = jnp.maximum(h, 0.0)                                      # (bt, 512)

    q = jnp.dot(h.astype(jnp.bfloat16), w4_ref[0],
                preferred_element_type=jnp.float32) + b4_ref[0]
    out_ref[0] = q.astype(out_ref.dtype)                         # (bt, n_quantiles)


def quantile_qritic_forward(state, action, params, *, tile_b: int = 512):
    """state: (B, S), action: (B, A) -> (B, n_nets, n_quantiles)."""
    sa = jnp.concatenate([state, action], axis=1).astype(jnp.float32)
    w1, b1, w2, b2, w3, b3, w4, b4 = params
    n_nets = w1.shape[0]
    B, in_dim = sa.shape
    n_quantiles = w4.shape[-1]

    # Batch tiling: fixed-size tiles (default 512 rows), padding the batch up
    # to a multiple of the tile so we never fall back to a huge full-batch
    # tile that could exceed scoped VMEM.  Tile is kept 8-row aligned.
    bt = min(int(tile_b), _round_up(B, 8))
    B_pad = _round_up(B, bt)
    if B_pad != B:
        sa = jnp.pad(sa, ((0, B_pad - B), (0, 0)))
    n_btiles = B_pad // bt

    def w_spec(shape):
        # Current net's slab; independent of the batch-tile index so Pallas
        # keeps it VMEM-resident across consecutive batch-tile steps.
        return pl.BlockSpec((1,) + shape[1:], lambda n, b: (n, 0, 0))

    # Advisory cost hint for the XLA scheduler.
    flops = 2 * B_pad * n_nets * (in_dim * HIDDEN
                                  + 2 * HIDDEN * HIDDEN
                                  + HIDDEN * n_quantiles)
    weight_bytes = n_nets * ((in_dim * HIDDEN + 2 * HIDDEN * HIDDEN
                              + HIDDEN * n_quantiles) * 2          # bf16 weights
                             + (3 * HIDDEN + n_quantiles) * 4)     # f32 biases
    bytes_accessed = (weight_bytes
                      + B_pad * in_dim * 4
                      + n_nets * B_pad * n_quantiles * 4)
    cost = pl.CostEstimate(flops=flops, transcendentals=0,
                           bytes_accessed=bytes_accessed)

    # Pin the megacore split to the nets axis (partitions the weight stream on
    # v7x instead of duplicating it); batch tiles run sequentially per core.
    if n_nets > 1:
        dim_sem = ("parallel", "arbitrary")
    else:
        dim_sem = ("arbitrary", "parallel")

    out = pl.pallas_call(
        _qcritic_kernel,
        out_shape=jax.ShapeDtypeStruct((n_nets, B_pad, n_quantiles), jnp.float32),
        grid_spec=pltpu.PrefetchScalarGridSpec(
            num_scalar_prefetch=0,
            # nets outer (weights stay resident across batch tiles), batch inner.
            grid=(n_nets, n_btiles),
            in_specs=[
                pl.BlockSpec((bt, in_dim), lambda n, b: (b, 0)),   # sa tile
                w_spec(w1.shape), w_spec(b1.shape),
                w_spec(w2.shape), w_spec(b2.shape),
                w_spec(w3.shape), w_spec(b3.shape),
                w_spec(w4.shape), w_spec(b4.shape),
            ],
            out_specs=pl.BlockSpec((1, bt, n_quantiles), lambda n, b: (n, b, 0)),
        ),
        compiler_params=pltpu.CompilerParams(dimension_semantics=dim_sem),
        cost_estimate=cost,
    )(sa, w1, b1, w2, b2, w3, b3, w4, b4)

    # Drop padded rows, then stack(..., dim=1) convention -> (B, n_nets, nq).
    return jnp.transpose(out[:, :B, :], (1, 0, 2))


def init_params(key, state_dim, action_dim, n_quantiles, n_nets):
    """torch.nn.Linear-style init (U[-1/sqrt(fan_in), +]); weights stored bf16."""
    in_dim = state_dim + action_dim
    dims = [(in_dim, HIDDEN), (HIDDEN, HIDDEN), (HIDDEN, HIDDEN), (HIDDEN, n_quantiles)]
    params = []
    for (fan_in, fan_out) in dims:
        key, kw, kb = jax.random.split(key, 3)
        bound = 1.0 / jnp.sqrt(jnp.float32(fan_in))
        w = jax.random.uniform(kw, (n_nets, fan_in, fan_out), jnp.float32,
                               minval=-bound, maxval=bound).astype(jnp.bfloat16)
        b = jax.random.uniform(kb, (n_nets, 1, fan_out), jnp.float32,
                               minval=-bound, maxval=bound)
        params += [w, b]
    return tuple(params)


def reference_forward(state, action, params):
    """Pure-JAX f32 reference (bf16 weights upcast) for correctness checking."""
    sa = jnp.concatenate([state, action], axis=1).astype(jnp.float32)
    w1, b1, w2, b2, w3, b3, w4, b4 = params
    outs = []
    for n in range(w1.shape[0]):
        h = jnp.maximum(sa @ w1[n].astype(jnp.float32) + b1[n, 0], 0.0)
        h = jnp.maximum(h @ w2[n].astype(jnp.float32) + b2[n, 0], 0.0)
        h = jnp.maximum(h @ w3[n].astype(jnp.float32) + b3[n, 0], 0.0)
        outs.append(h @ w4[n].astype(jnp.float32) + b4[n, 0])
    return jnp.stack(outs, axis=1)


def _run_case(key, state_dim, action_dim, n_quantiles, n_nets, batch, tile_b):
    kp, ks, ka = jax.random.split(key, 3)
    params = init_params(kp, state_dim, action_dim, n_quantiles, n_nets)
    state = jax.random.normal(ks, (batch, state_dim), jnp.float32)
    action = jax.random.normal(ka, (batch, action_dim), jnp.float32)

    out = quantile_qritic_forward(state, action, params, tile_b=tile_b)
    out = jax.block_until_ready(out)

    ref = reference_forward(state, action, params)
    assert out.shape == (batch, n_nets, n_quantiles), out.shape
    # bf16 matmul inputs with f32 accumulation vs. the f32 reference.
    assert jnp.allclose(out, ref, atol=1e-2, rtol=1e-2), "mismatch vs JAX reference"


if __name__ == "__main__":
    key = jax.random.PRNGKey(0)
    k1, k2 = jax.random.split(key)

    # Small / inference-like case (single batch tile).
    _run_case(k1, state_dim=24, action_dim=8, n_quantiles=25, n_nets=2,
              batch=2, tile_b=512)

    # Multi-tile case: exercises batch padding (200 -> 256), 4 batch tiles,
    # weight residency across batch tiles, and multi-net indexing.
    _run_case(k2, state_dim=17, action_dim=6, n_quantiles=25, n_nets=3,
              batch=200, tile_b=64)

    print("KERNEL_OK")
</pallas_src>

<mosaic_0001>
module attributes {stable_mosaic.version = 11 : i64} {
  func.func @_qcritic_kernel(%arg0: i32, %arg1: i32, %arg2: memref<8x32xf32, #tpu.memory_space<vmem>>, %arg3: memref<1x32x512xbf16, #tpu.memory_space<vmem>>, %arg4: memref<1x1x512xf32, #tpu.memory_space<vmem>>, %arg5: memref<1x512x512xbf16, #tpu.memory_space<vmem>>, %arg6: memref<1x1x512xf32, #tpu.memory_space<vmem>>, %arg7: memref<1x512x512xbf16, #tpu.memory_space<vmem>>, %arg8: memref<1x1x512xf32, #tpu.memory_space<vmem>>, %arg9: memref<1x512x25xbf16, #tpu.memory_space<vmem>>, %arg10: memref<1x1x25xf32, #tpu.memory_space<vmem>>, %arg11: memref<1x8x25xf32, #tpu.memory_space<vmem>>) attributes {dimension_semantics = [#tpu.dimension_semantics<parallel>, #tpu.dimension_semantics<arbitrary>], iteration_bounds = array<i64: 2, 1>, scalar_prefetch = 0 : i64, scratch_operands = 0 : i64, tpu.core_type = #tpu.core_type<tc>, window_params = [{transform_indices = @transform_0, window_bounds = array<i64: 8, 32>}, {transform_indices = @transform_1, window_bounds = array<i64: 1, 32, 512>}, {transform_indices = @transform_2, window_bounds = array<i64: 1, 1, 512>}, {transform_indices = @transform_3, window_bounds = array<i64: 1, 512, 512>}, {transform_indices = @transform_4, window_bounds = array<i64: 1, 1, 512>}, {transform_indices = @transform_5, window_bounds = array<i64: 1, 512, 512>}, {transform_indices = @transform_6, window_bounds = array<i64: 1, 1, 512>}, {transform_indices = @transform_7, window_bounds = array<i64: 1, 512, 25>}, {transform_indices = @transform_8, window_bounds = array<i64: 1, 1, 25>}, {transform_indices = @transform_9, window_bounds = array<i64: 1, 8, 25>}]} {
    %c0 = arith.constant 0 : index
    %c0_0 = arith.constant 0 : index
    %0 = vector.load %arg2[%c0, %c0_0] : memref<8x32xf32, #tpu.memory_space<vmem>>, vector<8x32xf32>
    %1 = arith.truncf %0 : vector<8x32xf32> to vector<8x32xbf16>
    %c0_1 = arith.constant 0 : index
    %c0_2 = arith.constant 0 : index
    %c0_3 = arith.constant 0 : index
    %2 = vector.load %arg3[%c0_1, %c0_2, %c0_3] : memref<1x32x512xbf16, #tpu.memory_space<vmem>>, vector<1x32x512xbf16>
    %3 = vector.shape_cast %2 : vector<1x32x512xbf16> to vector<32x512xbf16>
    %cst = arith.constant dense<0.000000e+00> : vector<8x512xf32>
    %4 = tpu.matmul %1, %3, %cst {dimension_numbers = #tpu.dot_dimension_numbers<[1], [0], [0], [1], [0, 0, 1, 1], [], []>} : vector<8x32xbf16>, vector<32x512xbf16>, vector<8x512xf32> -> vector<8x512xf32>
    %c0_4 = arith.constant 0 : index
    %c0_5 = arith.constant 0 : index
    %c0_6 = arith.constant 0 : index
    %5 = vector.load %arg4[%c0_4, %c0_5, %c0_6] : memref<1x1x512xf32, #tpu.memory_space<vmem>>, vector<1x1x512xf32>
    %6 = vector.shape_cast %5 : vector<1x1x512xf32> to vector<1x512xf32>
    %7 = vector.broadcast %6 : vector<1x512xf32> to vector<8x512xf32>
    %8 = arith.addf %4, %7 : vector<8x512xf32>
    %cst_7 = arith.constant 0.000000e+00 : f32
    %9 = vector.broadcast %cst_7 : f32 to vector<8x512xf32>
    %10 = arith.maximumf %8, %9 : vector<8x512xf32>
    %11 = arith.truncf %10 : vector<8x512xf32> to vector<8x512xbf16>
    %c0_8 = arith.constant 0 : index
    %c0_9 = arith.constant 0 : index
    %c0_10 = arith.constant 0 : index
    %12 = vector.load %arg5[%c0_8, %c0_9, %c0_10] : memref<1x512x512xbf16, #tpu.memory_space<vmem>>, vector<1x512x512xbf16>
    %13 = vector.shape_cast %12 : vector<1x512x512xbf16> to vector<512x512xbf16>
    %cst_11 = arith.constant dense<0.000000e+00> : vector<8x512xf32>
    %14 = tpu.matmul %11, %13, %cst_11 {dimension_numbers = #tpu.dot_dimension_numbers<[1], [0], [0], [1], [0, 0, 1, 1], [], []>} : vector<8x512xbf16>, vector<512x512xbf16>, vector<8x512xf32> -> vector<8x512xf32>
    %c0_12 = arith.constant 0 : index
    %c0_13 = arith.constant 0 : index
    %c0_14 = arith.constant 0 : index
    %15 = vector.load %arg6[%c0_12, %c0_13, %c0_14] : memref<1x1x512xf32, #tpu.memory_space<vmem>>, vector<1x1x512xf32>
    %16 = vector.shape_cast %15 : vector<1x1x512xf32> to vector<1x512xf32>
    %17 = vector.broadcast %16 : vector<1x512xf32> to vector<8x512xf32>
    %18 = arith.addf %14, %17 : vector<8x512xf32>
    %cst_15 = arith.constant 0.000000e+00 : f32
    %19 = vector.broadcast %cst_15 : f32 to vector<8x512xf32>
    %20 = arith.maximumf %18, %19 : vector<8x512xf32>
    %21 = arith.truncf %20 : vector<8x512xf32> to vector<8x512xbf16>
    %c0_16 = arith.constant 0 : index
    %c0_17 = arith.constant 0 : index
    %c0_18 = arith.constant 0 : index
    %22 = vector.load %arg7[%c0_16, %c0_17, %c0_18] : memref<1x512x512xbf16, #tpu.memory_space<vmem>>, vector<1x512x512xbf16>
    %23 = vector.shape_cast %22 : vector<1x512x512xbf16> to vector<512x512xbf16>
    %cst_19 = arith.constant dense<0.000000e+00> : vector<8x512xf32>
    %24 = tpu.matmul %21, %23, %cst_19 {dimension_numbers = #tpu.dot_dimension_numbers<[1], [0], [0], [1], [0, 0, 1, 1], [], []>} : vector<8x512xbf16>, vector<512x512xbf16>, vector<8x512xf32> -> vector<8x512xf32>
    %c0_20 = arith.constant 0 : index
    %c0_21 = arith.constant 0 : index
    %c0_22 = arith.constant 0 : index
    %25 = vector.load %arg8[%c0_20, %c0_21, %c0_22] : memref<1x1x512xf32, #tpu.memory_space<vmem>>, vector<1x1x512xf32>
    %26 = vector.shape_cast %25 : vector<1x1x512xf32> to vector<1x512xf32>
    %27 = vector.broadcast %26 : vector<1x512xf32> to vector<8x512xf32>
    %28 = arith.addf %24, %27 : vector<8x512xf32>
    %cst_23 = arith.constant 0.000000e+00 : f32
    %29 = vector.broadcast %cst_23 : f32 to vector<8x512xf32>
    %30 = arith.maximumf %28, %29 : vector<8x512xf32>
    %31 = arith.truncf %30 : vector<8x512xf32> to vector<8x512xbf16>
    %c0_24 = arith.constant 0 : index
    %c0_25 = arith.constant 0 : index
    %c0_26 = arith.constant 0 : index
    %32 = vector.load %arg9[%c0_24, %c0_25, %c0_26] : memref<1x512x25xbf16, #tpu.memory_space<vmem>>, vector<1x512x25xbf16>
    %33 = vector.shape_cast %32 : vector<1x512x25xbf16> to vector<512x25xbf16>
    %cst_27 = arith.constant dense<0.000000e+00> : vector<8x25xf32>
    %34 = tpu.matmul %31, %33, %cst_27 {dimension_numbers = #tpu.dot_dimension_numbers<[1], [0], [0], [1], [0, 0, 1, 1], [], []>} : vector<8x512xbf16>, vector<512x25xbf16>, vector<8x25xf32> -> vector<8x25xf32>
    %c0_28 = arith.constant 0 : index
    %c0_29 = arith.constant 0 : index
    %c0_30 = arith.constant 0 : index
    %35 = vector.load %arg10[%c0_28, %c0_29, %c0_30] : memref<1x1x25xf32, #tpu.memory_space<vmem>>, vector<1x1x25xf32>
    %36 = vector.shape_cast %35 : vector<1x1x25xf32> to vector<1x25xf32>
    %37 = vector.broadcast %36 : vector<1x25xf32> to vector<8x25xf32>
    %38 = arith.addf %34, %37 : vector<8x25xf32>
    %c0_31 = arith.constant 0 : index
    %c0_32 = arith.constant 0 : index
    %c0_33 = arith.constant 0 : index
    %39 = vector.load %arg11[%c0_31, %c0_32, %c0_33] : memref<1x8x25xf32, #tpu.memory_space<vmem>>, vector<1x8x25xf32>
    %40 = vector.shape_cast %39 : vector<1x8x25xf32> to vector<8x25xf32>
    %41 = vector.shape_cast %38 : vector<8x25xf32> to vector<1x8x25xf32>
    tpu.vector_store %arg11[%c0_31, %c0_32, %c0_33], %41 {strides = array<i32>} : memref<1x8x25xf32, #tpu.memory_space<vmem>>, vector<1x8x25xf32>,
    return
  }
  func.func @transform_0(%arg0: i32, %arg1: i32) -> (i32, i32) {
    %c0_i32 = arith.constant 0 : i32
    %c0_i32_0 = arith.constant 0 : i32
    return %arg1, %c0_i32 : i32, i32
  }
  func.func @transform_1(%arg0: i32, %arg1: i32) -> (i32, i32, i32) {
    %c0_i32 = arith.constant 0 : i32
    %c0_i32_0 = arith.constant 0 : i32
    %c0_i32_1 = arith.constant 0 : i32
    return %arg0, %c0_i32, %c0_i32_0 : i32, i32, i32
  }
  func.func @transform_2(%arg0: i32, %arg1: i32) -> (i32, i32, i32) {
    %c0_i32 = arith.constant 0 : i32
    %c0_i32_0 = arith.constant 0 : i32
    %c0_i32_1 = arith.constant 0 : i32
    return %arg0, %c0_i32, %c0_i32_0 : i32, i32, i32
  }
  func.func @transform_3(%arg0: i32, %arg1: i32) -> (i32, i32, i32) {
    %c0_i32 = arith.constant 0 : i32
    %c0_i32_0 = arith.constant 0 : i32
    %c0_i32_1 = arith.constant 0 : i32
    return %arg0, %c0_i32, %c0_i32_0 : i32, i32, i32
  }
  func.func @transform_4(%arg0: i32, %arg1: i32) -> (i32, i32, i32) {
    %c0_i32 = arith.constant 0 : i32
    %c0_i32_0 = arith.constant 0 : i32
    %c0_i32_1 = arith.constant 0 : i32
    return %arg0, %c0_i32, %c0_i32_0 : i32, i32, i32
  }
  func.func @transform_5(%arg0: i32, %arg1: i32) -> (i32, i32, i32) {
    %c0_i32 = arith.constant 0 : i32
    %c0_i32_0 = arith.constant 0 : i32
    %c0_i32_1 = arith.constant 0 : i32
    return %arg0, %c0_i32, %c0_i32_0 : i32, i32, i32
  }
  func.func @transform_6(%arg0: i32, %arg1: i32) -> (i32, i32, i32) {
    %c0_i32 = arith.constant 0 : i32
    %c0_i32_0 = arith.constant 0 : i32
    %c0_i32_1 = arith.constant 0 : i32
    return %arg0, %c0_i32, %c0_i32_0 : i32, i32, i32
  }
  func.func @transform_7(%arg0: i32, %arg1: i32) -> (i32, i32, i32) {
    %c0_i32 = arith.constant 0 : i32
    %c0_i32_0 = arith.constant 0 : i32
    %c0_i32_1 = arith.constant 0 : i32
    return %arg0, %c0_i32, %c0_i32_0 : i32, i32, i32
  }
  func.func @transform_8(%arg0: i32, %arg1: i32) -> (i32, i32, i32) {
    %c0_i32 = arith.constant 0 : i32
    %c0_i32_0 = arith.constant 0 : i32
    %c0_i32_1 = arith.constant 0 : i32
    return %arg0, %c0_i32, %c0_i32_0 : i32, i32, i32
  }
  func.func @transform_9(%arg0: i32, %arg1: i32) -> (i32, i32, i32) {
    %c0_i32 = arith.constant 0 : i32
    %c0_i32_0 = arith.constant 0 : i32
    return %arg0, %arg1, %c0_i32 : i32, i32, i32
  }
}

</mosaic_0001>

<llo_original>
// kernel: tpu_custom_call.1
$region0: #{tpu_custom_call.1}
  #allocation0 [shape = 'u32[]', space=smem, size = 0x4, offset = 0x4, fixed_abs, tag = 'smem constant byte address 0x4 - core index']
  #allocation1 [shape = 'u32[144,128]{1,0:T(1,128)}', space=vmem, size = 0x12000, scoped, tag = 'internal scratch']
  %s0 = inlined_call_operand.vmem [shape: f32[8,32], index: 0, kind: input, shape index: {}]
  %s1 = inlined_call_operand.vmem [shape: bf16[2,32,512], index: 1, kind: input, shape index: {}]
  %s2 = inlined_call_operand.vmem [shape: f32[2,1,512], index: 2, kind: input, shape index: {}]
  %s3 = inlined_call_operand.hbm [shape: bf16[2,512,512], index: 3, kind: input, shape index: {}]
  %s4 = inlined_call_operand.vmem [shape: f32[2,1,512], index: 4, kind: input, shape index: {}]
  %s5 = inlined_call_operand.hbm [shape: bf16[2,512,512], index: 5, kind: input, shape index: {}]
  %s6 = inlined_call_operand.vmem [shape: f32[2,1,512], index: 6, kind: input, shape index: {}]
  %s7 = inlined_call_operand.vmem [shape: bf16[2,512,25], index: 7, kind: input, shape index: {}]
  %s8 = inlined_call_operand.vmem [shape: f32[2,1,25], index: 8, kind: input, shape index: {}]
  %s9 = inlined_call_operand.hbm [shape: f32[2,8,25], index: 9, kind: output, shape index: {}]
  %s10 = sld [smem:[#allocation0]]
  $region77: #{tpu_custom_call.1} parent=0
    _
  %s12 = ssub.s32 1, %s10
  %s13 = scalar_select 0, %s12, %s10
  $region1: #{tpu_custom_call.1} parent=0
    #allocation2 [shape = 'u8[1048576]{0}', space=vmem, size = 0x100000, scoped, tag = 'input window, operand 3']
    #allocation3 [shape = 's32[2]{0}', space=sflag, size = 0x8, scoped, tag = 'scoped memory for tpu_custom_call.1']
    #allocation4 [shape = 's32[2]{0}', space=sflag, size = 0x8, scoped, tag = 'scoped memory for tpu_custom_call.1']
    #allocation5 [shape = 'u8[1048576]{0}', space=vmem, size = 0x100000, scoped, tag = 'input window, operand 5']
    #allocation6 [shape = 's32[2]{0}', space=sflag, size = 0x8, scoped, tag = 'scoped memory for tpu_custom_call.1']
    #allocation7 [shape = 'u8[8192]{0}', space=vmem, size = 0x2000, scoped, tag = 'output window, operand 0']
    %14 = vsyncpa [#allocation3], 0
    %s15 = scalar_lea.sflag [#allocation3], 1
    %16 = vsyncpa %s15, 0
    %17 = vsyncpa [#allocation6], 0
    %s18 = scalar_lea.sflag [#allocation6], 1
    %19 = vsyncpa %s18, 0
    %20 = vsyncpa [#allocation4], 0
    %s21 = scalar_lea.sflag [#allocation4], 1
    %22 = vsyncpa %s21, 0
    loop: start=0, step=1, limit=4
    $region2: #{tpu_custom_call.1} parent=1 // loop_pre_header
      _
    $region3: #{tpu_custom_call.1} parent=1 // loop_header
      %s24 = sphi 0, %s28
      %p25 = scmp.ge.s32.totalorder %s24, 4
      %s31 = sphi 0, %s43
      %s32 = sphi 0, %s39
      %s33 = sphi 0, %s31
      %s34 = sphi 0, %s32
      %s35 = sphi 0, %s33
      %s36 = sphi 0, %s34
      %s46 = sphi 0, %s48
      %s49 = sphi 0, %s46
      %s50 = sphi 0, %s49
      %s66 = sphi 0, %s50
      %s72 = sphi 0, %s74
      %s75 = sphi 0, %s72
      %s76 = sphi 0, %s75
      %s92 = sphi 0, %s76
      %s98 = sphi 0, %s100
      %s101 = sphi 0, %s98
      %s102 = sphi 0, %s101
      %s118 = sphi 0, %s102
      %s124 = sphi 0, %s126
      %s127 = sphi 0, %s124
      %s128 = sphi 0, %s127
      %s144 = sphi 0, %s128
      %s150 = sphi 0, %s152
      %s153 = sphi 0, %s150
      %s154 = sphi 0, %s153
      %s170 = sphi 0, %s154
      %s176 = sphi 0, %s178
      %s179 = sphi 0, %s176
      %s180 = sphi 0, %s179
      %s196 = sphi 0, %s180
      %s202 = sphi 0, %s204
      %s205 = sphi 0, %s202
      %s206 = sphi 0, %s205
      %s222 = sphi 0, %s206
      %s228 = sphi 0, %s230
      %s231 = sphi 0, %s228
      %s232 = sphi 0, %s231
      %s248 = sphi 0, %s232
      %s254 = sphi 0, %s256
      %s257 = sphi 0, %s254
      %s258 = sphi 0, %s257
      %s274 = sphi 0, %s258
      %s282 = sphi 0, %s284
      %s285 = sphi 0, %s282
      %s286 = sphi 0, %s285
      %s302 = sphi 0, %s286
    $region4: #{tpu_custom_call.1} parent=1 // loop_header_branch
      %27 = sbr.rel (%p25) target = $region8
    $region5: #{tpu_custom_call.1} parent=1 // loop_body
      %s29 = ssub.s32 %s24, 1
      %s30 = ssub.s32 %s24, 2
      %s37 = sadd.s32 1, %s32
      %p38 = scmp.ge.s32.totalorder %s37, 1
      %s39 = scalar_select %p38, 0, %s37
      %s40 = sadd.s32 1, %s31
      %s41 = scalar_select %p38, %s40, %s31
      %p42 = scmp.ge.s32.totalorder %s41, 2
      %s43 = scalar_select %p42, 0, %s41
      %s44 = ssub.s32 %s32, %s39
      %p45 = scmp.eq.s32.totalorder %s44, 0
      %s47 = sadd.s32 %s46, 1
      %s48 = scalar_select %p45, %s46, %s47
      %p51 = pneg %p45
      %p52 = scmp.eq.s32.totalorder %s24, 1
      %p53 = por %p51, %p52
      %p54 = scmp.ne.s32.totalorder %s46, %s49
      %p55 = scmp.eq.s32.totalorder %s24, 0
      %p56 = por %p54, %p55
      %p57 = scmp.ne.s32.totalorder %s46, %s49
      %p58 = scmp.eq.s32.totalorder %s29, 1
      %p59 = por %p57, %p58
      %p60 = scmp.ne.s32.totalorder %s49, %s50
      %p61 = scmp.eq.s32.totalorder %s29, 0
      %p62 = por %p60, %p61
      %p63 = scmp.ne.s32.totalorder %s49, %s50
      %p64 = scmp.eq.s32.totalorder %s30, 1
      %p65 = por %p63, %p64
      %p67 = scmp.ne.s32.totalorder %s50, %s66
      %p68 = scmp.eq.s32.totalorder %s30, 0
      %p69 = por %p67, %p68
      %s70 = ssub.s32 %s31, %s43
      %p71 = scmp.eq.s32.totalorder %s70, 0
      %s73 = sadd.s32 %s72, 1
      %s74 = scalar_select %p71, %s72, %s73
      %p77 = pneg %p71
      %p78 = scmp.eq.s32.totalorder %s24, 1
      %p79 = por %p77, %p78
      %p80 = scmp.ne.s32.totalorder %s72, %s75
      %p81 = scmp.eq.s32.totalorder %s24, 0
      %p82 = por %p80, %p81
      %p83 = scmp.ne.s32.totalorder %s72, %s75
      %p84 = scmp.eq.s32.totalorder %s29, 1
      %p85 = por %p83, %p84
      %p86 = scmp.ne.s32.totalorder %s75, %s76
      %p87 = scmp.eq.s32.totalorder %s29, 0
      %p88 = por %p86, %p87
      %p89 = scmp.ne.s32.totalorder %s75, %s76
      %p90 = scmp.eq.s32.totalorder %s30, 1
      %p91 = por %p89, %p90
      %p93 = scmp.ne.s32.totalorder %s76, %s92
      %p94 = scmp.eq.s32.totalorder %s30, 0
      %p95 = por %p93, %p94
      %s96 = ssub.s32 %s31, %s43
      %p97 = scmp.eq.s32.totalorder %s96, 0
      %s99 = sadd.s32 %s98, 1
      %s100 = scalar_select %p97, %s98, %s99
      %p103 = pneg %p97
      %p104 = scmp.eq.s32.totalorder %s24, 1
      %p105 = por %p103, %p104
      %p106 = scmp.ne.s32.totalorder %s98, %s101
      %p107 = scmp.eq.s32.totalorder %s24, 0
      %p108 = por %p106, %p107
      %p109 = scmp.ne.s32.totalorder %s98, %s101
      %p110 = scmp.eq.s32.totalorder %s29, 1
      %p111 = por %p109, %p110
      %p112 = scmp.ne.s32.totalorder %s101, %s102
      %p113 = scmp.eq.s32.totalorder %s29, 0
      %p114 = por %p112, %p113
      %p115 = scmp.ne.s32.totalorder %s101, %s102
      %p116 = scmp.eq.s32.totalorder %s30, 1
      %p117 = por %p115, %p116
      %p119 = scmp.ne.s32.totalorder %s102, %s118
      %p120 = scmp.eq.s32.totalorder %s30, 0
      %p121 = por %p119, %p120
      %s122 = ssub.s32 %s31, %s43
      %p123 = scmp.eq.s32.totalorder %s122, 0
      %s125 = sadd.s32 %s124, 1
      %s126 = scalar_select %p123, %s124, %s125
      %p129 = pneg %p123
      %p130 = scmp.eq.s32.totalorder %s24, 1
      %p131 = por %p129, %p130
      %p132 = scmp.ne.s32.totalorder %s124, %s127
      %p133 = scmp.eq.s32.totalorder %s24, 0
      %p134 = por %p132, %p133
      %p135 = scmp.ne.s32.totalorder %s124, %s127
      %p136 = scmp.eq.s32.totalorder %s29, 1
      %p137 = por %p135, %p136
      %p138 = scmp.ne.s32.totalorder %s127, %s128
      %p139 = scmp.eq.s32.totalorder %s29, 0
      %p140 = por %p138, %p139
      %p141 = scmp.ne.s32.totalorder %s127, %s128
      %p142 = scmp.eq.s32.totalorder %s30, 1
      %p143 = por %p141, %p142
      %p145 = scmp.ne.s32.totalorder %s128, %s144
      %p146 = scmp.eq.s32.totalorder %s30, 0
      %p147 = por %p145, %p146
      %s148 = ssub.s32 %s31, %s43
      %p149 = scmp.eq.s32.totalorder %s148, 0
      %s151 = sadd.s32 %s150, 1
      %s152 = scalar_select %p149, %s150, %s151
      %p155 = pneg %p149
      %p156 = scmp.eq.s32.totalorder %s24, 1
      %p157 = por %p155, %p156
      %p158 = scmp.ne.s32.totalorder %s150, %s153
      %p159 = scmp.eq.s32.totalorder %s24, 0
      %p160 = por %p158, %p159
      %p161 = scmp.ne.s32.totalorder %s150, %s153
      %p162 = scmp.eq.s32.totalorder %s29, 1
      %p163 = por %p161, %p162
      %p164 = scmp.ne.s32.totalorder %s153, %s154
      %p165 = scmp.eq.s32.totalorder %s29, 0
      %p166 = por %p164, %p165
      %p167 = scmp.ne.s32.totalorder %s153, %s154
      %p168 = scmp.eq.s32.totalorder %s30, 1
      %p169 = por %p167, %p168
      %p171 = scmp.ne.s32.totalorder %s154, %s170
      %p172 = scmp.eq.s32.totalorder %s30, 0
      %p173 = por %p171, %p172
      %s174 = ssub.s32 %s31, %s43
      %p175 = scmp.eq.s32.totalorder %s174, 0
      %s177 = sadd.s32 %s176, 1
      %s178 = scalar_select %p175, %s176, %s177
      %p181 = pneg %p175
      %p182 = scmp.eq.s32.totalorder %s24, 1
      %p183 = por %p181, %p182
      %p184 = scmp.ne.s32.totalorder %s176, %s179
      %p185 = scmp.eq.s32.totalorder %s24, 0
      %p186 = por %p184, %p185
      %p187 = scmp.ne.s32.totalorder %s176, %s179
      %p188 = scmp.eq.s32.totalorder %s29, 1
      %p189 = por %p187, %p188
      %p190 = scmp.ne.s32.totalorder %s179, %s180
      %p191 = scmp.eq.s32.totalorder %s29, 0
      %p192 = por %p190, %p191
      %p193 = scmp.ne.s32.totalorder %s179, %s180
      %p194 = scmp.eq.s32.totalorder %s30, 1
      %p195 = por %p193, %p194
      %p197 = scmp.ne.s32.totalorder %s180, %s196
      %p198 = scmp.eq.s32.totalorder %s30, 0
      %p199 = por %p197, %p198
      %s200 = ssub.s32 %s31, %s43
      %p201 = scmp.eq.s32.totalorder %s200, 0
      %s203 = sadd.s32 %s202, 1
      %s204 = scalar_select %p201, %s202, %s203
      %p207 = pneg %p201
      %p208 = scmp.eq.s32.totalorder %s24, 1
      %p209 = por %p207, %p208
      %p210 = scmp.ne.s32.totalorder %s202, %s205
      %p211 = scmp.eq.s32.totalorder %s24, 0
      %p212 = por %p210, %p211
      %p213 = scmp.ne.s32.totalorder %s202, %s205
      %p214 = scmp.eq.s32.totalorder %s29, 1
      %p215 = por %p213, %p214
      %p216 = scmp.ne.s32.totalorder %s205, %s206
      %p217 = scmp.eq.s32.totalorder %s29, 0
      %p218 = por %p216, %p217
      %p219 = scmp.ne.s32.totalorder %s205, %s206
      %p220 = scmp.eq.s32.totalorder %s30, 1
      %p221 = por %p219, %p220
      %p223 = scmp.ne.s32.totalorder %s206, %s222
      %p224 = scmp.eq.s32.totalorder %s30, 0
      %p225 = por %p223, %p224
      %s226 = ssub.s32 %s31, %s43
      %p227 = scmp.eq.s32.totalorder %s226, 0
      %s229 = sadd.s32 %s228, 1
      %s230 = scalar_select %p227, %s228, %s229
      %p233 = pneg %p227
      %p234 = scmp.eq.s32.totalorder %s24, 1
      %p235 = por %p233, %p234
      %p236 = scmp.ne.s32.totalorder %s228, %s231
      %p237 = scmp.eq.s32.totalorder %s24, 0
      %p238 = por %p236, %p237
      %p239 = scmp.ne.s32.totalorder %s228, %s231
      %p240 = scmp.eq.s32.totalorder %s29, 1
      %p241 = por %p239, %p240
      %p242 = scmp.ne.s32.totalorder %s231, %s232
      %p243 = scmp.eq.s32.totalorder %s29, 0
      %p244 = por %p242, %p243
      %p245 = scmp.ne.s32.totalorder %s231, %s232
      %p246 = scmp.eq.s32.totalorder %s30, 1
      %p247 = por %p245, %p246
      %p249 = scmp.ne.s32.totalorder %s232, %s248
      %p250 = scmp.eq.s32.totalorder %s30, 0
      %p251 = por %p249, %p250
      %s252 = ssub.s32 %s31, %s43
      %p253 = scmp.eq.s32.totalorder %s252, 0
      %s255 = sadd.s32 %s254, 1
      %s256 = scalar_select %p253, %s254, %s255
      %p259 = pneg %p253
      %p260 = scmp.eq.s32.totalorder %s24, 1
      %p261 = por %p259, %p260
      %p262 = scmp.ne.s32.totalorder %s254, %s257
      %p263 = scmp.eq.s32.totalorder %s24, 0
      %p264 = por %p262, %p263
      %p265 = scmp.ne.s32.totalorder %s254, %s257
      %p266 = scmp.eq.s32.totalorder %s29, 1
      %p267 = por %p265, %p266
      %p268 = scmp.ne.s32.totalorder %s257, %s258
      %p269 = scmp.eq.s32.totalorder %s29, 0
      %p270 = por %p268, %p269
      %p271 = scmp.ne.s32.totalorder %s257, %s258
      %p272 = scmp.eq.s32.totalorder %s30, 1
      %p273 = por %p271, %p272
      %p275 = scmp.ne.s32.totalorder %s258, %s274
      %p276 = scmp.eq.s32.totalorder %s30, 0
      %p277 = por %p275, %p276
      %s278 = ssub.s32 %s31, %s43
      %s279 = ssub.s32 %s32, %s39
      %s280 = sor.u32 %s278, %s279
      %p281 = scmp.eq.s32.totalorder %s280, 0
      %s283 = sadd.s32 %s282, 1
      %s284 = scalar_select %p281, %s282, %s283
      %p287 = pneg %p281
      %p288 = scmp.eq.s32.totalorder %s24, 1
      %p289 = por %p287, %p288
      %p290 = scmp.ne.s32.totalorder %s282, %s285
      %p291 = scmp.eq.s32.totalorder %s24, 0
      %p292 = por %p290, %p291
      %p293 = scmp.ne.s32.totalorder %s282, %s285
      %p294 = scmp.eq.s32.totalorder %s29, 1
      %p295 = por %p293, %p294
      %p296 = scmp.ne.s32.totalorder %s285, %s286
      %p297 = scmp.eq.s32.totalorder %s29, 0
      %p298 = por %p296, %p297
      %p299 = scmp.ne.s32.totalorder %s285, %s286
      %p300 = scmp.eq.s32.totalorder %s30, 1
      %p301 = por %p299, %p300
      %p303 = scmp.ne.s32.totalorder %s286, %s302
      %p304 = scmp.eq.s32.totalorder %s30, 0
      %p305 = por %p303, %p304
      %p306 = scmp.le.s32.totalorder 1, %s24
      %p307 = scmp.lt.s32.totalorder %s24, 3
      %p308 = pnand %p306, %p307
      %p309 = pneg %p308
      // Predicated region
      $region9: #{tpu_custom_call.1} parent=5 // pred_check
        _
      $region10: #{tpu_custom_call.1} parent=5 // pred_check_branch
        %311 = sbr.rel (%p308) target = $region12
      $region11: #{tpu_custom_call.1} parent=5 // pred_region
        %s312 = ssub.s32 %s24, 1
        // Predicated region
        $region13: #{tpu_custom_call.1} parent=11 // pred_check
          %p313 = pneg %p62
        $region14: #{tpu_custom_call.1} parent=11 // pred_check_branch
          %315 = sbr.rel (%p313) target = $region16
        $region15: #{tpu_custom_call.1} parent=11 // pred_region
          %p316 = scmp.lt.s32.totalorder %s34, 0
          %s317 = scalar_select %p316, %s34, 0
          %s318 = smul.addr %s317, 8
          %s319 = scalar_lea.vmem %s0, %s318
        $region16: #{tpu_custom_call.1} parent=11 // pred_fallthru
          _
      $region12: #{tpu_custom_call.1} parent=5 // pred_fallthru
        _
      %p320 = scmp.lt.s32.totalorder %s24, 2
      // Predicated region
      $region17: #{tpu_custom_call.1} parent=5 // pred_check
        %p321 = pneg %p320
      $region18: #{tpu_custom_call.1} parent=5 // pred_check_branch
        %323 = sbr.rel (%p321) target = $region20
      $region19: #{tpu_custom_call.1} parent=5 // pred_region
        // Predicated region
        $region21: #{tpu_custom_call.1} parent=19 // pred_check
          %p324 = pneg %p82
        $region22: #{tpu_custom_call.1} parent=19 // pred_check_branch
          %326 = sbr.rel (%p324) target = $region24
        $region23: #{tpu_custom_call.1} parent=19 // pred_region
          %p327 = scmp.lt.s32.totalorder %s31, 1
          %s328 = scalar_select %p327, %s31, 1
          %s329 = smul.addr %s328, 16
          %s330 = smul.addr %s329, 4
          %s331 = scalar_lea.vmem %s1, %s330
        $region24: #{tpu_custom_call.1} parent=19 // pred_fallthru
          _
        // Predicated region
        $region25: #{tpu_custom_call.1} parent=19 // pred_check
          %p332 = pneg %p108
        $region26: #{tpu_custom_call.1} parent=19 // pred_check_branch
          %334 = sbr.rel (%p332) target = $region28
        $region27: #{tpu_custom_call.1} parent=19 // pred_region
          %p335 = scmp.lt.s32.totalorder %s31, 1
          %s336 = scalar_select %p335, %s31, 1
          %s337 = smul.addr %s336, 4
          %s338 = scalar_lea.vmem %s2, %s337
        $region28: #{tpu_custom_call.1} parent=19 // pred_fallthru
          _
        // Predicated region
        $region29: #{tpu_custom_call.1} parent=19 // pred_check
          %p339 = pneg %p134
        $region30: #{tpu_custom_call.1} parent=19 // pred_check_branch
          %341 = sbr.rel (%p339) target = $region32
        $region31: #{tpu_custom_call.1} parent=19 // pred_region
          %s342 = sand.u32 %s124, 1
          %s343 = scalar_lea.sflag [#allocation3], %s342
          %s344 = sand.u32 %s124, 1
          %s345 = smul.addr %s344, 1024
          %s346 = scalar_lea.vmem [#allocation2], %s345
          %s348 = ssub.s32 16384, 16384
          %349 = vsyncadd %s343, %s348
          %s350 = smul.addr %s31, 256
          %s351 = smul.addr %s350, 64
          %s352 = scalar_lea.hbm %s3, %s351
          %s353 = sshll.u32 %s346, 4
          %s354 = int_to_ptr.vmem [resolvable:$true] %s353
          %359 = dma.hbm_to_vmem [thread:$0]  %s352, 16384, %s354, %s343, 256, 256, 16
        $region32: #{tpu_custom_call.1} parent=19 // pred_fallthru
          _
        // Predicated region
        $region33: #{tpu_custom_call.1} parent=19 // pred_check
          %p360 = pneg %p160
        $region34: #{tpu_custom_call.1} parent=19 // pred_check_branch
          %362 = sbr.rel (%p360) target = $region36
        $region35: #{tpu_custom_call.1} parent=19 // pred_region
          %p363 = scmp.lt.s32.totalorder %s31, 1
          %s364 = scalar_select %p363, %s31, 1
          %s365 = smul.addr %s364, 4
          %s366 = scalar_lea.vmem %s4, %s365
        $region36: #{tpu_custom_call.1} parent=19 // pred_fallthru
          _
        // Predicated region
        $region37: #{tpu_custom_call.1} parent=19 // pred_check
          %p367 = pneg %p186
        $region38: #{tpu_custom_call.1} parent=19 // pred_check_branch
          %369 = sbr.rel (%p367) target = $region40
        $region39: #{tpu_custom_call.1} parent=19 // pred_region
          %s370 = sand.u32 %s176, 1
          %s371 = scalar_lea.sflag [#allocation6], %s370
          %s372 = sand.u32 %s176, 1
          %s373 = smul.addr %s372, 1024
          %s374 = scalar_lea.vmem [#allocation5], %s373
          %s376 = ssub.s32 16384, 16384
          %377 = vsyncadd %s371, %s376
          %s378 = smul.addr %s31, 256
          %s379 = smul.addr %s378, 64
          %s380 = scalar_lea.hbm %s5, %s379
          %s381 = sshll.u32 %s374, 4
          %s382 = int_to_ptr.vmem [resolvable:$true] %s381
          %387 = dma.hbm_to_vmem [thread:$0]  %s380, 16384, %s382, %s371, 256, 256, 16
        $region40: #{tpu_custom_call.1} parent=19 // pred_fallthru
          _
        // Predicated region
        $region41: #{tpu_custom_call.1} parent=19 // pred_check
          %p388 = pneg %p212
        $region42: #{tpu_custom_call.1} parent=19 // pred_check_branch
          %390 = sbr.rel (%p388) target = $region44
        $region43: #{tpu_custom_call.1} parent=19 // pred_region
          %p391 = scmp.lt.s32.totalorder %s31, 1
          %s392 = scalar_select %p391, %s31, 1
          %s393 = smul.addr %s392, 4
          %s394 = scalar_lea.vmem %s6, %s393
        $region44: #{tpu_custom_call.1} parent=19 // pred_fallthru
          _
        // Predicated region
        $region45: #{tpu_custom_call.1} parent=19 // pred_check
          %p395 = pneg %p238
        $region46: #{tpu_custom_call.1} parent=19 // pred_check_branch
          %397 = sbr.rel (%p395) target = $region48
        $region47: #{tpu_custom_call.1} parent=19 // pred_region
          %p398 = scmp.lt.s32.totalorder %s31, 1
          %s399 = scalar_select %p398, %s31, 1
          %s400 = smul.addr %s399, 64
          %s401 = smul.addr %s400, 4
          %s402 = scalar_lea.vmem %s7, %s401
        $region48: #{tpu_custom_call.1} parent=19 // pred_fallthru
          _
        // Predicated region
        $region49: #{tpu_custom_call.1} parent=19 // pred_check
          %p403 = pneg %p264
        $region50: #{tpu_custom_call.1} parent=19 // pred_check_branch
          %405 = sbr.rel (%p403) target = $region52
        $region51: #{tpu_custom_call.1} parent=19 // pred_region
          %p406 = scmp.lt.s32.totalorder %s31, 1
          %s407 = scalar_select %p406, %s31, 1
          %s408 = scalar_lea.vmem %s8, %s407
        $region52: #{tpu_custom_call.1} parent=19 // pred_fallthru
          _
      $region20: #{tpu_custom_call.1} parent=5 // pred_fallthru
        _
      %p409 = scmp.le.s32.totalorder 1, %s24
      %p410 = scmp.lt.s32.totalorder %s24, 3
      %p411 = pnand %p409, %p410
      %p412 = pneg %p411
      // Predicated region
      $region53: #{tpu_custom_call.1} parent=5 // pred_check
        _
      $region54: #{tpu_custom_call.1} parent=5 // pred_check_branch
        %414 = sbr.rel (%p411) target = $region56
      $region55: #{tpu_custom_call.1} parent=5 // pred_region
        %s415 = ssub.s32 %s24, 1
        %s416 = sand.u32 %s127, 1
        %s417 = scalar_lea.sflag [#allocation3], %s416
        %s418 = sand.u32 %s127, 1
        %s419 = smul.addr %s418, 1024
        %s420 = scalar_lea.vmem [#allocation2], %s419
        // Predicated region
        $region57: #{tpu_custom_call.1} parent=55 // pred_check
          %p421 = pneg %p140
        $region58: #{tpu_custom_call.1} parent=55 // pred_check_branch
          %423 = sbr.rel (%p421) target = $region60
        $region59: #{tpu_custom_call.1} parent=55 // pred_region
          %424 = dma.done %s417, 16384
        $region60: #{tpu_custom_call.1} parent=55 // pred_fallthru
          _
        %s425 = sand.u32 %s179, 1
        %s426 = scalar_lea.sflag [#allocation6], %s425
        %s427 = sand.u32 %s179, 1
        %s428 = smul.addr %s427, 1024
        %s429 = scalar_lea.vmem [#allocation5], %s428
        // Predicated region
        $region61: #{tpu_custom_call.1} parent=55 // pred_check
          %p430 = pneg %p192
        $region62: #{tpu_custom_call.1} parent=55 // pred_check_branch
          %432 = sbr.rel (%p430) target = $region64
        $region63: #{tpu_custom_call.1} parent=55 // pred_region
          %433 = dma.done %s426, 16384
        $region64: #{tpu_custom_call.1} parent=55 // pred_fallthru
          _
        %p434 = scmp.lt.s32.totalorder %s34, 0
        %s435 = scalar_select %p434, %s34, 0
        %s436 = smul.addr %s435, 8
        %s437 = scalar_lea.vmem %s0, %s436
        %p438 = pneg %p62
        %p439 = pneg %p59
        %p440 = scmp.lt.s32.totalorder %s33, 1
        %s441 = scalar_select %p440, %s33, 1
        %s442 = smul.addr %s441, 16
        %s443 = smul.addr %s442, 4
        %s444 = scalar_lea.vmem %s1, %s443
        %p445 = pneg %p88
        %p446 = pneg %p85
        %p447 = scmp.lt.s32.totalorder %s33, 1
        %s448 = scalar_select %p447, %s33, 1
        %s449 = smul.addr %s448, 4
        %s450 = scalar_lea.vmem %s2, %s449
        %p451 = pneg %p114
        %p452 = pneg %p111
        %s453 = sand.u32 %s127, 1
        %s454 = scalar_lea.sflag [#allocation3], %s453
        %s455 = sand.u32 %s127, 1
        %s456 = smul.addr %s455, 1024
        %s457 = scalar_lea.vmem [#allocation2], %s456
        %p458 = pneg %p140
        %p459 = pneg %p137
        %p460 = scmp.lt.s32.totalorder %s33, 1
        %s461 = scalar_select %p460, %s33, 1
        %s462 = smul.addr %s461, 4
        %s463 = scalar_lea.vmem %s4, %s462
        %p464 = pneg %p166
        %p465 = pneg %p163
        %s466 = sand.u32 %s179, 1
        %s467 = scalar_lea.sflag [#allocation6], %s466
        %s468 = sand.u32 %s179, 1
        %s469 = smul.addr %s468, 1024
        %s470 = scalar_lea.vmem [#allocation5], %s469
        %p471 = pneg %p192
        %p472 = pneg %p189
        %p473 = scmp.lt.s32.totalorder %s33, 1
        %s474 = scalar_select %p473, %s33, 1
        %s475 = smul.addr %s474, 4
        %s476 = scalar_lea.vmem %s6, %s475
        %p477 = pneg %p218
        %p478 = pneg %p215
        %p479 = scmp.lt.s32.totalorder %s33, 1
        %s480 = scalar_select %p479, %s33, 1
        %s481 = smul.addr %s480, 64
        %s482 = smul.addr %s481, 4
        %s483 = scalar_lea.vmem %s7, %s482
        %p484 = pneg %p244
        %p485 = pneg %p241
        %p486 = scmp.lt.s32.totalorder %s33, 1
        %s487 = scalar_select %p486, %s33, 1
        %s488 = scalar_lea.vmem %s8, %s487
        %p489 = pneg %p270
        %p490 = pneg %p267
        %p491 = pneg %p298
        %p492 = pneg %p295
        %s493 = sand.u32 %s285, 1
        %s494 = scalar_lea.sflag [#allocation4], %s493
        %s495 = sand.u32 %s285, 1
        %s496 = smul.addr %s495, 8
        %s497 = scalar_lea.vmem [#allocation7], %s496
        %p498 = scmp.lt.s32.totalorder %s34, 0
        %s499 = scalar_select %p498, %s34, 0
        %s500 = smul.addr %s499, 8
        %s501 = scalar_lea.vmem %s0, %s500
        %p502 = scmp.lt.s32.totalorder %s33, 1
        %s503 = scalar_select %p502, %s33, 1
        %s504 = smul.addr %s503, 16
        %s505 = smul.addr %s504, 4
        %s506 = scalar_lea.vmem %s1, %s505
        %p507 = scmp.lt.s32.totalorder %s33, 1
        %s508 = scalar_select %p507, %s33, 1
        %s509 = smul.addr %s508, 4
        %s510 = scalar_lea.vmem %s2, %s509
        %p511 = scmp.lt.s32.totalorder %s33, 1
        %s512 = scalar_select %p511, %s33, 1
        %s513 = smul.addr %s512, 4
        %s514 = scalar_lea.vmem %s4, %s513
        %p515 = scmp.lt.s32.totalorder %s33, 1
        %s516 = scalar_select %p515, %s33, 1
        %s517 = smul.addr %s516, 4
        %s518 = scalar_lea.vmem %s6, %s517
        %p519 = scmp.lt.s32.totalorder %s33, 1
        %s520 = scalar_select %p519, %s33, 1
        %s521 = smul.addr %s520, 64
        %s522 = smul.addr %s521, 4
        %s523 = scalar_lea.vmem %s7, %s522
        %p524 = scmp.lt.s32.totalorder %s33, 1
        %s525 = scalar_select %p524, %s33, 1
        %s526 = scalar_lea.vmem %s8, %s525
        %v528 = vld [vmem:[%s501] sm:$0xff]
        %v529 = vpack.c.bf16 %v528, %v528
        %v530 = vld [vmem:[%s506] sm:$0xff]
        %v531 = vld [vmem:[%s506 + $0x8] sm:$0xff]
        %v532 = vld [vmem:[%s506 + $0x10] sm:$0xff]
        %v533 = vld [vmem:[%s506 + $0x18] sm:$0xff]
        %v534 = vld [vmem:[%s506 + $0x20] sm:$0xff]
        %v535 = vld [vmem:[%s506 + $0x28] sm:$0xff]
        %v536 = vld [vmem:[%s506 + $0x30] sm:$0xff]
        %v537 = vld [vmem:[%s506 + $0x38] sm:$0xff]
        %v538 = vld [vmem:[%s510] sm:$0xf]
        %v540 = vlaneseq
        %v541 = vshrl.u32 %v540, 7
        %v542 = vsub.s32 0, %v541
        %v543 = vrot.slane %v538, %v542
        %v544 = vlaneseq
        %v545 = vshrl.u32 %v544, 7
        %v546 = vsub.s32 1, %v545
        %v547 = vrot.slane %v538, %v546
        %v548 = vlaneseq
        %v549 = vshrl.u32 %v548, 7
        %v550 = vsub.s32 2, %v549
        %v551 = vrot.slane %v538, %v550
        %v552 = vlaneseq
        %v553 = vshrl.u32 %v552, 7
        %v554 = vsub.s32 3, %v553
        %v555 = vrot.slane %v538, %v554
        %v568 = vunpack.c.l.b16 %v530
        %v569 = vunpack.c.h.b16 %v530
        %v570 = vunpack.c.l.b16 %v531
        %v571 = vunpack.c.h.b16 %v531
        %v572 = vunpack.c.l.b16 %v532
        %v573 = vunpack.c.h.b16 %v532
        %v574 = vunpack.c.l.b16 %v533
        %v575 = vunpack.c.h.b16 %v533
        %v576 = vunpack.c.l.b16 %v534
        %v577 = vunpack.c.h.b16 %v534
        %v578 = vunpack.c.l.b16 %v535
        %v579 = vunpack.c.h.b16 %v535
        %v580 = vunpack.c.l.b16 %v536
        %v581 = vunpack.c.h.b16 %v536
        %v582 = vunpack.c.l.b16 %v537
        %v583 = vunpack.c.h.b16 %v537
        %v584 = vpack.c.b16 %v572, %v568
        %v585 = vpack.c.b16 %v573, %v569
        %v586 = vpack.c.b16 %v574, %v570
        %v587 = vpack.c.b16 %v575, %v571
        %v588 = vpack.c.b16 %v580, %v576
        %v589 = vpack.c.b16 %v581, %v577
        %v590 = vpack.c.b16 %v582, %v578
        %v591 = vpack.c.b16 %v583, %v579
        %vm600 = vcmask 261120
        %v602 = vsel %vm600, %v529, 0
        %604 = vmatprep.subr.bf16.mxu0 %v585
        %605 = vmatpush1.bf16.msra.mxu0 %v584
        %606 = vmatprep.subr.bf16.mxu0 %v589
        %607 = vmatpush1.bf16.msra.mxu0 %v588
        %608 = vmatprep.subr.bf16.mxu0 0
        %609 = vmatpush1.bf16.msra.mxu0 0
        %610 = vmatprep.subr.bf16.mxu0 0
        %611 = vmatpush1.bf16.msra.mxu0 0
        %612 = vmatprep.subr.bf16.mxu0 0
        %613 = vmatpush1.bf16.msra.mxu0 0
        %614 = vmatprep.subr.bf16.mxu0 0
        %615 = vmatpush1.bf16.msra.mxu0 0
        %616 = vmatprep.subr.bf16.mxu0 0
        %617 = vmatpush1.bf16.msra.mxu0 0
        %618 = vmatprep.subr.bf16.mxu0 0
        %619 = vmatpush1.bf16.msra.mxu0 0
        %620 = vmatprep.subr.bf16.mxu0 0
        %621 = vmatpush1.bf16.msra.mxu0 0
        %622 = vmatprep.subr.bf16.mxu0 0
        %623 = vmatpush1.bf16.msra.mxu0 0
        %624 = vmatprep.subr.bf16.mxu0 0
        %625 = vmatpush1.bf16.msra.mxu0 0
        %626 = vmatprep.subr.bf16.mxu0 0
        %627 = vmatpush1.bf16.msra.mxu0 0
        %628 = vmatprep.subr.bf16.mxu0 0
        %629 = vmatpush1.bf16.msra.mxu0 0
        %630 = vmatprep.subr.bf16.mxu0 0
        %631 = vmatpush1.bf16.msra.mxu0 0
        %632 = vmatprep.subr.bf16.mxu0 0
        %633 = vmatpush1.bf16.msra.mxu0 0
        %634 = vmatprep.subr.bf16.mxu0 0
        %635 = vmatpush1.bf16.msra.mxu0 0
        %636 = vmatprep.mubr.bf16.mxu0 0
        %637 = vmatmul.mubr.bf16.gmra.mrb[0].mxu0 %v602
        %v638 = vpop.f32.mrb[0].mxu0
        %v639 = vadd.f32 %v543, %v638
        %v640 = vpop.f32.mrb[0].mxu0
        %v641 = vadd.f32 %v547, %v640
        %v642 = vpop.f32.mrb[0].mxu0
        %v643 = vpop.f32.mrb[0].mxu0
        %644 = vdwg.mxu0
        %645 = vmatprep.subr.bf16.mxu0 %v587
        %646 = vmatpush1.bf16.msra.mxu0 %v586
        %647 = vmatprep.subr.bf16.mxu0 %v591
        %648 = vmatpush1.bf16.msra.mxu0 %v590
        %649 = vmatprep.subr.bf16.mxu0 0
        %650 = vmatpush1.bf16.msra.mxu0 0
        %651 = vmatprep.subr.bf16.mxu0 0
        %652 = vmatpush1.bf16.msra.mxu0 0
        %653 = vmatprep.subr.bf16.mxu0 0
        %654 = vmatpush1.bf16.msra.mxu0 0
        %655 = vmatprep.subr.bf16.mxu0 0
        %656 = vmatpush1.bf16.msra.mxu0 0
        %657 = vmatprep.subr.bf16.mxu0 0
        %658 = vmatpush1.bf16.msra.mxu0 0
        %659 = vmatprep.subr.bf16.mxu0 0
        %660 = vmatpush1.bf16.msra.mxu0 0
        %661 = vmatprep.subr.bf16.mxu0 0
        %662 = vmatpush1.bf16.msra.mxu0 0
        %663 = vmatprep.subr.bf16.mxu0 0
        %664 = vmatpush1.bf16.msra.mxu0 0
        %665 = vmatprep.subr.bf16.mxu0 0
        %666 = vmatpush1.bf16.msra.mxu0 0
        %667 = vmatprep.subr.bf16.mxu0 0
        %668 = vmatpush1.bf16.msra.mxu0 0
        %669 = vmatprep.subr.bf16.mxu0 0
        %670 = vmatpush1.bf16.msra.mxu0 0
        %671 = vmatprep.subr.bf16.mxu0 0
        %672 = vmatpush1.bf16.msra.mxu0 0
        %673 = vmatprep.subr.bf16.mxu0 0
        %674 = vmatpush1.bf16.msra.mxu0 0
        %675 = vmatprep.subr.bf16.mxu0 0
        %676 = vmatpush1.bf16.msra.mxu0 0
        %677 = vmatprep.mubr.bf16.mxu0 0
        %678 = vmatmul.mubr.bf16.gmra.mrb[0].mxu0 %v602
        %v679 = vpop.f32.mrb[0].mxu0
        %v680 = vadd.f32 %v551, %v679
        %v681 = vpop.f32.mrb[0].mxu0
        %v682 = vadd.f32 %v555, %v681
        %v683 = vpop.f32.mrb[0].mxu0
        %v684 = vpop.f32.mrb[0].mxu0
        %685 = vdwg.mxu0
        %v686 = vmax.f32 %v639, 0.0
        %v687 = vmax.f32 %v641, 0.0
        %v688 = vmax.f32 %v680, 0.0
        %v689 = vmax.f32 %v682, 0.0
        %v690 = vpack.c.bf16 %v686, %v686
        %v691 = vpack.c.bf16 %v687, %v687
        %v692 = vpack.c.bf16 %v688, %v688
        %v693 = vpack.c.bf16 %v689, %v689
        %v694 = vld [vmem:[%s420] sm:$0xff]
        %v695 = vld [vmem:[%s420 + $0x8] sm:$0xff]
        %v696 = vld [vmem:[%s420 + $0x10] sm:$0xff]
        %v697 = vld [vmem:[%s420 + $0x18] sm:$0xff]
        %v698 = vld [vmem:[%s420 + $0x20] sm:$0xff]
        %v699 = vld [vmem:[%s420 + $0x28] sm:$0xff]
        %v700 = vld [vmem:[%s420 + $0x30] sm:$0xff]
        %v701 = vld [vmem:[%s420 + $0x38] sm:$0xff]
        %v702 = vld [vmem:[%s420 + $0x40] sm:$0xff]
        %v703 = vld [vmem:[%s420 + $0x48] sm:$0xff]
        %v704 = vld [vmem:[%s420 + $0x50] sm:$0xff]
        %v705 = vld [vmem:[%s420 + $0x58] sm:$0xff]
        %v706 = vld [vmem:[%s420 + $0x60] sm:$0xff]
        %v707 = vld [vmem:[%s420 + $0x68] sm:$0xff]
        %v708 = vld [vmem:[%s420 + $0x70] sm:$0xff]
        %v709 = vld [vmem:[%s420 + $0x78] sm:$0xff]
        %v710 = vld [vmem:[%s420 + $0x80] sm:$0xff]
        %v711 = vld [vmem:[%s420 + $0x88] sm:$0xff]
        %v712 = vld [vmem:[%s420 + $0x90] sm:$0xff]
        %v713 = vld [vmem:[%s420 + $0x98] sm:$0xff]
        %v714 = vld [vmem:[%s420 + $0xa0] sm:$0xff]
        %v715 = vld [vmem:[%s420 + $0xa8] sm:$0xff]
        %v716 = vld [vmem:[%s420 + $0xb0] sm:$0xff]
        %v717 = vld [vmem:[%s420 + $0xb8] sm:$0xff]
        %v718 = vld [vmem:[%s420 + $0xc0] sm:$0xff]
        %v719 = vld [vmem:[%s420 + $0xc8] sm:$0xff]
        %v720 = vld [vmem:[%s420 + $0xd0] sm:$0xff]
        %v721 = vld [vmem:[%s420 + $0xd8] sm:$0xff]
        %v722 = vld [vmem:[%s420 + $0xe0] sm:$0xff]
        %v723 = vld [vmem:[%s420 + $0xe8] sm:$0xff]
        %v724 = vld [vmem:[%s420 + $0xf0] sm:$0xff]
        %v725 = vld [vmem:[%s420 + $0xf8] sm:$0xff]
        %v726 = vld [vmem:[%s420 + $0x100] sm:$0xff]
        %v727 = vld [vmem:[%s420 + $0x108] sm:$0xff]
        %v728 = vld [vmem:[%s420 + $0x110] sm:$0xff]
        %v729 = vld [vmem:[%s420 + $0x118] sm:$0xff]
        %v730 = vld [vmem:[%s420 + $0x120] sm:$0xff]
        %v731 = vld [vmem:[%s420 + $0x128] sm:$0xff]
        %v732 = vld [vmem:[%s420 + $0x130] sm:$0xff]
        %v733 = vld [vmem:[%s420 + $0x138] sm:$0xff]
        %v734 = vld [vmem:[%s420 + $0x140] sm:$0xff]
        %v735 = vld [vmem:[%s420 + $0x148] sm:$0xff]
        %v736 = vld [vmem:[%s420 + $0x150] sm:$0xff]
        %v737 = vld [vmem:[%s420 + $0x158] sm:$0xff]
        %v738 = vld [vmem:[%s420 + $0x160] sm:$0xff]
        %v739 = vld [vmem:[%s420 + $0x168] sm:$0xff]
        %v740 = vld [vmem:[%s420 + $0x170] sm:$0xff]
        %v741 = vld [vmem:[%s420 + $0x178] sm:$0xff]
        %v742 = vld [vmem:[%s420 + $0x180] sm:$0xff]
        %v743 = vld [vmem:[%s420 + $0x188] sm:$0xff]
        %v744 = vld [vmem:[%s420 + $0x190] sm:$0xff]
        %v745 = vld [vmem:[%s420 + $0x198] sm:$0xff]
        %v746 = vld [vmem:[%s420 + $0x1a0] sm:$0xff]
        %v747 = vld [vmem:[%s420 + $0x1a8] sm:$0xff]
        %v748 = vld [vmem:[%s420 + $0x1b0] sm:$0xff]
        %v749 = vld [vmem:[%s420 + $0x1b8] sm:$0xff]
        %v750 = vld [vmem:[%s420 + $0x1c0] sm:$0xff]
        %v751 = vld [vmem:[%s420 + $0x1c8] sm:$0xff]
        %v752 = vld [vmem:[%s420 + $0x1d0] sm:$0xff]
        %v753 = vld [vmem:[%s420 + $0x1d8] sm:$0xff]
        %v754 = vld [vmem:[%s420 + $0x1e0] sm:$0xff]
        %v755 = vld [vmem:[%s420 + $0x1e8] sm:$0xff]
        %v756 = vld [vmem:[%s420 + $0x1f0] sm:$0xff]
        %v757 = vld [vmem:[%s420 + $0x1f8] sm:$0xff]
        %v758 = vld [vmem:[%s420 + $0x200] sm:$0xff]
        %v759 = vld [vmem:[%s420 + $0x208] sm:$0xff]
        %v760 = vld [vmem:[%s420 + $0x210] sm:$0xff]
        %v761 = vld [vmem:[%s420 + $0x218] sm:$0xff]
        %v762 = vld [vmem:[%s420 + $0x220] sm:$0xff]
        %v763 = vld [vmem:[%s420 + $0x228] sm:$0xff]
        %v764 = vld [vmem:[%s420 + $0x230] sm:$0xff]
        %v765 = vld [vmem:[%s420 + $0x238] sm:$0xff]
        %v766 = vld [vmem:[%s420 + $0x240] sm:$0xff]
        %v767 = vld [vmem:[%s420 + $0x248] sm:$0xff]
        %v768 = vld [vmem:[%s420 + $0x250] sm:$0xff]
        %v769 = vld [vmem:[%s420 + $0x258] sm:$0xff]
        %v770 = vld [vmem:[%s420 + $0x260] sm:$0xff]
        %v771 = vld [vmem:[%s420 + $0x268] sm:$0xff]
        %v772 = vld [vmem:[%s420 + $0x270] sm:$0xff]
        %v773 = vld [vmem:[%s420 + $0x278] sm:$0xff]
        %v774 = vld [vmem:[%s420 + $0x280] sm:$0xff]
        %v775 = vld [vmem:[%s420 + $0x288] sm:$0xff]
        %v776 = vld [vmem:[%s420 + $0x290] sm:$0xff]
        %v777 = vld [vmem:[%s420 + $0x298] sm:$0xff]
        %v778 = vld [vmem:[%s420 + $0x2a0] sm:$0xff]
        %v779 = vld [vmem:[%s420 + $0x2a8] sm:$0xff]
        %v780 = vld [vmem:[%s420 + $0x2b0] sm:$0xff]
        %v781 = vld [vmem:[%s420 + $0x2b8] sm:$0xff]
        %v782 = vld [vmem:[%s420 + $0x2c0] sm:$0xff]
        %v783 = vld [vmem:[%s420 + $0x2c8] sm:$0xff]
        %v784 = vld [vmem:[%s420 + $0x2d0] sm:$0xff]
        %v785 = vld [vmem:[%s420 + $0x2d8] sm:$0xff]
        %v786 = vld [vmem:[%s420 + $0x2e0] sm:$0xff]
        %v787 = vld [vmem:[%s420 + $0x2e8] sm:$0xff]
        %v788 = vld [vmem:[%s420 + $0x2f0] sm:$0xff]
        %v789 = vld [vmem:[%s420 + $0x2f8] sm:$0xff]
        %v790 = vld [vmem:[%s420 + $0x300] sm:$0xff]
        %v791 = vld [vmem:[%s420 + $0x308] sm:$0xff]
        %v792 = vld [vmem:[%s420 + $0x310] sm:$0xff]
        %v793 = vld [vmem:[%s420 + $0x318] sm:$0xff]
        %v794 = vld [vmem:[%s420 + $0x320] sm:$0xff]
        %v795 = vld [vmem:[%s420 + $0x328] sm:$0xff]
        %v796 = vld [vmem:[%s420 + $0x330] sm:$0xff]
        %v797 = vld [vmem:[%s420 + $0x338] sm:$0xff]
        %v798 = vld [vmem:[%s420 + $0x340] sm:$0xff]
        %v799 = vld [vmem:[%s420 + $0x348] sm:$0xff]
        %v800 = vld [vmem:[%s420 + $0x350] sm:$0xff]
        %v801 = vld [vmem:[%s420 + $0x358] sm:$0xff]
        %v802 = vld [vmem:[%s420 + $0x360] sm:$0xff]
        %v803 = vld [vmem:[%s420 + $0x368] sm:$0xff]
        %v804 = vld [vmem:[%s420 + $0x370] sm:$0xff]
        %v805 = vld [vmem:[%s420 + $0x378] sm:$0xff]
        %v806 = vld [vmem:[%s420 + $0x380] sm:$0xff]
        %v807 = vld [vmem:[%s420 + $0x388] sm:$0xff]
        %v808 = vld [vmem:[%s420 + $0x390] sm:$0xff]
        %v809 = vld [vmem:[%s420 + $0x398] sm:$0xff]
        %v810 = vld [vmem:[%s420 + $0x3a0] sm:$0xff]
        %v811 = vld [vmem:[%s420 + $0x3a8] sm:$0xff]
        %v812 = vld [vmem:[%s420 + $0x3b0] sm:$0xff]
        %v813 = vld [vmem:[%s420 + $0x3b8] sm:$0xff]
        %v814 = vld [vmem:[%s420 + $0x3c0] sm:$0xff]
        %v815 = vld [vmem:[%s420 + $0x3c8] sm:$0xff]
        %v816 = vld [vmem:[%s420 + $0x3d0] sm:$0xff]
        %v817 = vld [vmem:[%s420 + $0x3d8] sm:$0xff]
        %v818 = vld [vmem:[%s420 + $0x3e0] sm:$0xff]
        %v819 = vld [vmem:[%s420 + $0x3e8] sm:$0xff]
        %v820 = vld [vmem:[%s420 + $0x3f0] sm:$0xff]
        %v821 = vld [vmem:[%s420 + $0x3f8] sm:$0xff]
        %v822 = vld [vmem:[%s514] sm:$0xf]
        %v824 = vlaneseq
        %v825 = vshrl.u32 %v824, 7
        %v826 = vsub.s32 0, %v825
        %v827 = vrot.slane %v822, %v826
        %v828 = vlaneseq
        %v829 = vshrl.u32 %v828, 7
        %v830 = vsub.s32 1, %v829
        %v831 = vrot.slane %v822, %v830
        %v832 = vlaneseq
        %v833 = vshrl.u32 %v832, 7
        %v834 = vsub.s32 2, %v833
        %v835 = vrot.slane %v822, %v834
        %v836 = vlaneseq
        %v837 = vshrl.u32 %v836, 7
        %v838 = vsub.s32 3, %v837
        %v839 = vrot.slane %v822, %v838
        %v972 = vunpack.c.l.b16 %v694
        %v973 = vunpack.c.h.b16 %v694
        %v974 = vunpack.c.l.b16 %v695
        %v975 = vunpack.c.h.b16 %v695
        %v976 = vunpack.c.l.b16 %v696
        %v977 = vunpack.c.h.b16 %v696
        %v978 = vunpack.c.l.b16 %v697
        %v979 = vunpack.c.h.b16 %v697
        %v980 = vunpack.c.l.b16 %v698
        %v981 = vunpack.c.h.b16 %v698
        %v982 = vunpack.c.l.b16 %v699
        %v983 = vunpack.c.h.b16 %v699
        %v984 = vunpack.c.l.b16 %v700
        %v985 = vunpack.c.h.b16 %v700
        %v986 = vunpack.c.l.b16 %v701
        %v987 = vunpack.c.h.b16 %v701
        %v988 = vunpack.c.l.b16 %v702
        %v989 = vunpack.c.h.b16 %v702
        %v990 = vunpack.c.l.b16 %v703
        %v991 = vunpack.c.h.b16 %v703
        %v992 = vunpack.c.l.b16 %v704
        %v993 = vunpack.c.h.b16 %v704
        %v994 = vunpack.c.l.b16 %v705
        %v995 = vunpack.c.h.b16 %v705
        %v996 = vunpack.c.l.b16 %v706
        %v997 = vunpack.c.h.b16 %v706
        %v998 = vunpack.c.l.b16 %v707
        %v999 = vunpack.c.h.b16 %v707
        %v1000 = vunpack.c.l.b16 %v708
        %v1001 = vunpack.c.h.b16 %v708
        %v1002 = vunpack.c.l.b16 %v709
        %v1003 = vunpack.c.h.b16 %v709
        %v1004 = vunpack.c.l.b16 %v710
        %v1005 = vunpack.c.h.b16 %v710
        %v1006 = vunpack.c.l.b16 %v711
        %v1007 = vunpack.c.h.b16 %v711
        %v1008 = vunpack.c.l.b16 %v712
        %v1009 = vunpack.c.h.b16 %v712
        %v1010 = vunpack.c.l.b16 %v713
        %v1011 = vunpack.c.h.b16 %v713
        %v1012 = vunpack.c.l.b16 %v714
        %v1013 = vunpack.c.h.b16 %v714
        %v1014 = vunpack.c.l.b16 %v715
        %v1015 = vunpack.c.h.b16 %v715
        %v1016 = vunpack.c.l.b16 %v716
        %v1017 = vunpack.c.h.b16 %v716
        %v1018 = vunpack.c.l.b16 %v717
        %v1019 = vunpack.c.h.b16 %v717
        %v1020 = vunpack.c.l.b16 %v718
        %v1021 = vunpack.c.h.b16 %v718
        %v1022 = vunpack.c.l.b16 %v719
        %v1023 = vunpack.c.h.b16 %v719
        %v1024 = vunpack.c.l.b16 %v720
        %v1025 = vunpack.c.h.b16 %v720
        %v1026 = vunpack.c.l.b16 %v721
        %v1027 = vunpack.c.h.b16 %v721
        %v1028 = vunpack.c.l.b16 %v722
        %v1029 = vunpack.c.h.b16 %v722
        %v1030 = vunpack.c.l.b16 %v723
        %v1031 = vunpack.c.h.b16 %v723
        %v1032 = vunpack.c.l.b16 %v724
        %v1033 = vunpack.c.h.b16 %v724
        %v1034 = vunpack.c.l.b16 %v725
        %v1035 = vunpack.c.h.b16 %v725
        %v1036 = vunpack.c.l.b16 %v726
        %v1037 = vunpack.c.h.b16 %v726
        %v1038 = vunpack.c.l.b16 %v727
        %v1039 = vunpack.c.h.b16 %v727
        %v1040 = vunpack.c.l.b16 %v728
        %v1041 = vunpack.c.h.b16 %v728
        %v1042 = vunpack.c.l.b16 %v729
        %v1043 = vunpack.c.h.b16 %v729
        %v1044 = vunpack.c.l.b16 %v730
        %v1045 = vunpack.c.h.b16 %v730
        %v1046 = vunpack.c.l.b16 %v731
        %v1047 = vunpack.c.h.b16 %v731
        %v1048 = vunpack.c.l.b16 %v732
        %v1049 = vunpack.c.h.b16 %v732
        %v1050 = vunpack.c.l.b16 %v733
        %v1051 = vunpack.c.h.b16 %v733
        %v1052 = vunpack.c.l.b16 %v734
        %v1053 = vunpack.c.h.b16 %v734
        %v1054 = vunpack.c.l.b16 %v735
        %v1055 = vunpack.c.h.b16 %v735
        %v1056 = vunpack.c.l.b16 %v736
        %v1057 = vunpack.c.h.b16 %v736
        %v1058 = vunpack.c.l.b16 %v737
        %v1059 = vunpack.c.h.b16 %v737
        %v1060 = vunpack.c.l.b16 %v738
        %v1061 = vunpack.c.h.b16 %v738
        %v1062 = vunpack.c.l.b16 %v739
        %v1063 = vunpack.c.h.b16 %v739
        %v1064 = vunpack.c.l.b16 %v740
        %v1065 = vunpack.c.h.b16 %v740
        %v1066 = vunpack.c.l.b16 %v741
        %v1067 = vunpack.c.h.b16 %v741
        %v1068 = vunpack.c.l.b16 %v742
        %v1069 = vunpack.c.h.b16 %v742
        %v1070 = vunpack.c.l.b16 %v743
        %v1071 = vunpack.c.h.b16 %v743
        %v1072 = vunpack.c.l.b16 %v744
        %v1073 = vunpack.c.h.b16 %v744
        %v1074 = vunpack.c.l.b16 %v745
        %v1075 = vunpack.c.h.b16 %v745
        %v1076 = vunpack.c.l.b16 %v746
        %v1077 = vunpack.c.h.b16 %v746
        %v1078 = vunpack.c.l.b16 %v747
        %v1079 = vunpack.c.h.b16 %v747
        %v1080 = vunpack.c.l.b16 %v748
        %v1081 = vunpack.c.h.b16 %v748
        %v1082 = vunpack.c.l.b16 %v749
        %v1083 = vunpack.c.h.b16 %v749
        %v1084 = vunpack.c.l.b16 %v750
        %v1085 = vunpack.c.h.b16 %v750
        %v1086 = vunpack.c.l.b16 %v751
        %v1087 = vunpack.c.h.b16 %v751
        %v1088 = vunpack.c.l.b16 %v752
        %v1089 = vunpack.c.h.b16 %v752
        %v1090 = vunpack.c.l.b16 %v753
        %v1091 = vunpack.c.h.b16 %v753
        %v1092 = vunpack.c.l.b16 %v754
        %v1093 = vunpack.c.h.b16 %v754
        %v1094 = vunpack.c.l.b16 %v755
        %v1095 = vunpack.c.h.b16 %v755
        %v1096 = vunpack.c.l.b16 %v756
        %v1097 = vunpack.c.h.b16 %v756
        %v1098 = vunpack.c.l.b16 %v757
        %v1099 = vunpack.c.h.b16 %v757
        %v1100 = vunpack.c.l.b16 %v758
        %v1101 = vunpack.c.h.b16 %v758
        %v1102 = vunpack.c.l.b16 %v759
        %v1103 = vunpack.c.h.b16 %v759
        %v1104 = vunpack.c.l.b16 %v760
        %v1105 = vunpack.c.h.b16 %v760
        %v1106 = vunpack.c.l.b16 %v761
        %v1107 = vunpack.c.h.b16 %v761
        %v1108 = vunpack.c.l.b16 %v762
        %v1109 = vunpack.c.h.b16 %v762
        %v1110 = vunpack.c.l.b16 %v763
        %v1111 = vunpack.c.h.b16 %v763
        %v1112 = vunpack.c.l.b16 %v764
        %v1113 = vunpack.c.h.b16 %v764
        %v1114 = vunpack.c.l.b16 %v765
        %v1115 = vunpack.c.h.b16 %v765
        %v1116 = vunpack.c.l.b16 %v766
        %v1117 = vunpack.c.h.b16 %v766
        %v1118 = vunpack.c.l.b16 %v767
        %v1119 = vunpack.c.h.b16 %v767
        %v1120 = vunpack.c.l.b16 %v768
        %v1121 = vunpack.c.h.b16 %v768
        %v1122 = vunpack.c.l.b16 %v769
        %v1123 = vunpack.c.h.b16 %v769
        %v1124 = vunpack.c.l.b16 %v770
        %v1125 = vunpack.c.h.b16 %v770
        %v1126 = vunpack.c.l.b16 %v771
        %v1127 = vunpack.c.h.b16 %v771
        %v1128 = vunpack.c.l.b16 %v772
        %v1129 = vunpack.c.h.b16 %v772
        %v1130 = vunpack.c.l.b16 %v773
        %v1131 = vunpack.c.h.b16 %v773
        %v1132 = vunpack.c.l.b16 %v774
        %v1133 = vunpack.c.h.b16 %v774
        %v1134 = vunpack.c.l.b16 %v775
        %v1135 = vunpack.c.h.b16 %v775
        %v1136 = vunpack.c.l.b16 %v776
        %v1137 = vunpack.c.h.b16 %v776
        %v1138 = vunpack.c.l.b16 %v777
        %v1139 = vunpack.c.h.b16 %v777
        %v1140 = vunpack.c.l.b16 %v778
        %v1141 = vunpack.c.h.b16 %v778
        %v1142 = vunpack.c.l.b16 %v779
        %v1143 = vunpack.c.h.b16 %v779
        %v1144 = vunpack.c.l.b16 %v780
        %v1145 = vunpack.c.h.b16 %v780
        %v1146 = vunpack.c.l.b16 %v781
        %v1147 = vunpack.c.h.b16 %v781
        %v1148 = vunpack.c.l.b16 %v782
        %v1149 = vunpack.c.h.b16 %v782
        %v1150 = vunpack.c.l.b16 %v783
        %v1151 = vunpack.c.h.b16 %v783
        %v1152 = vunpack.c.l.b16 %v784
        %v1153 = vunpack.c.h.b16 %v784
        %v1154 = vunpack.c.l.b16 %v785
        %v1155 = vunpack.c.h.b16 %v785
        %v1156 = vunpack.c.l.b16 %v786
        %v1157 = vunpack.c.h.b16 %v786
        %v1158 = vunpack.c.l.b16 %v787
        %v1159 = vunpack.c.h.b16 %v787
        %v1160 = vunpack.c.l.b16 %v788
        %v1161 = vunpack.c.h.b16 %v788
        %v1162 = vunpack.c.l.b16 %v789
        %v1163 = vunpack.c.h.b16 %v789
        %v1164 = vunpack.c.l.b16 %v790
        %v1165 = vunpack.c.h.b16 %v790
        %v1166 = vunpack.c.l.b16 %v791
        %v1167 = vunpack.c.h.b16 %v791
        %v1168 = vunpack.c.l.b16 %v792
        %v1169 = vunpack.c.h.b16 %v792
        %v1170 = vunpack.c.l.b16 %v793
        %v1171 = vunpack.c.h.b16 %v793
        %v1172 = vunpack.c.l.b16 %v794
        %v1173 = vunpack.c.h.b16 %v794
        %v1174 = vunpack.c.l.b16 %v795
        %v1175 = vunpack.c.h.b16 %v795
        %v1176 = vunpack.c.l.b16 %v796
        %v1177 = vunpack.c.h.b16 %v796
        %v1178 = vunpack.c.l.b16 %v797
        %v1179 = vunpack.c.h.b16 %v797
        %v1180 = vunpack.c.l.b16 %v798
        %v1181 = vunpack.c.h.b16 %v798
        %v1182 = vunpack.c.l.b16 %v799
        %v1183 = vunpack.c.h.b16 %v799
        %v1184 = vunpack.c.l.b16 %v800
        %v1185 = vunpack.c.h.b16 %v800
        %v1186 = vunpack.c.l.b16 %v801
        %v1187 = vunpack.c.h.b16 %v801
        %v1188 = vunpack.c.l.b16 %v802
        %v1189 = vunpack.c.h.b16 %v802
        %v1190 = vunpack.c.l.b16 %v803
        %v1191 = vunpack.c.h.b16 %v803
        %v1192 = vunpack.c.l.b16 %v804
        %v1193 = vunpack.c.h.b16 %v804
        %v1194 = vunpack.c.l.b16 %v805
        %v1195 = vunpack.c.h.b16 %v805
        %v1196 = vunpack.c.l.b16 %v806
        %v1197 = vunpack.c.h.b16 %v806
        %v1198 = vunpack.c.l.b16 %v807
        %v1199 = vunpack.c.h.b16 %v807
        %v1200 = vunpack.c.l.b16 %v808
        %v1201 = vunpack.c.h.b16 %v808
        %v1202 = vunpack.c.l.b16 %v809
        %v1203 = vunpack.c.h.b16 %v809
        %v1204 = vunpack.c.l.b16 %v810
        %v1205 = vunpack.c.h.b16 %v810
        %v1206 = vunpack.c.l.b16 %v811
        %v1207 = vunpack.c.h.b16 %v811
        %v1208 = vunpack.c.l.b16 %v812
        %v1209 = vunpack.c.h.b16 %v812
        %v1210 = vunpack.c.l.b16 %v813
        %v1211 = vunpack.c.h.b16 %v813
        %v1212 = vunpack.c.l.b16 %v814
        %v1213 = vunpack.c.h.b16 %v814
        %v1214 = vunpack.c.l.b16 %v815
        %v1215 = vunpack.c.h.b16 %v815
        %v1216 = vunpack.c.l.b16 %v816
        %v1217 = vunpack.c.h.b16 %v816
        %v1218 = vunpack.c.l.b16 %v817
        %v1219 = vunpack.c.h.b16 %v817
        %v1220 = vunpack.c.l.b16 %v818
        %v1221 = vunpack.c.h.b16 %v818
        %v1222 = vunpack.c.l.b16 %v819
        %v1223 = vunpack.c.h.b16 %v819
        %v1224 = vunpack.c.l.b16 %v820
        %v1225 = vunpack.c.h.b16 %v820
        %v1226 = vunpack.c.l.b16 %v821
        %v1227 = vunpack.c.h.b16 %v821
        %v1228 = vpack.c.b16 %v976, %v972
        %v1229 = vpack.c.b16 %v977, %v973
        %v1230 = vpack.c.b16 %v978, %v974
        %v1231 = vpack.c.b16 %v979, %v975
        %v1232 = vpack.c.b16 %v984, %v980
        %v1233 = vpack.c.b16 %v985, %v981
        %v1234 = vpack.c.b16 %v986, %v982
        %v1235 = vpack.c.b16 %v987, %v983
        %v1236 = vpack.c.b16 %v992, %v988
        %v1237 = vpack.c.b16 %v993, %v989
        %v1238 = vpack.c.b16 %v994, %v990
        %v1239 = vpack.c.b16 %v995, %v991
        %v1240 = vpack.c.b16 %v1000, %v996
        %v1241 = vpack.c.b16 %v1001, %v997
        %v1242 = vpack.c.b16 %v1002, %v998
        %v1243 = vpack.c.b16 %v1003, %v999
        %v1244 = vpack.c.b16 %v1008, %v1004
        %v1245 = vpack.c.b16 %v1009, %v1005
        %v1246 = vpack.c.b16 %v1010, %v1006
        %v1247 = vpack.c.b16 %v1011, %v1007
        %v1248 = vpack.c.b16 %v1016, %v1012
        %v1249 = vpack.c.b16 %v1017, %v1013
        %v1250 = vpack.c.b16 %v1018, %v1014
        %v1251 = vpack.c.b16 %v1019, %v1015
        %v1252 = vpack.c.b16 %v1024, %v1020
        %v1253 = vpack.c.b16 %v1025, %v1021
        %v1254 = vpack.c.b16 %v1026, %v1022
        %v1255 = vpack.c.b16 %v1027, %v1023
        %v1256 = vpack.c.b16 %v1032, %v1028
        %v1257 = vpack.c.b16 %v1033, %v1029
        %v1258 = vpack.c.b16 %v1034, %v1030
        %v1259 = vpack.c.b16 %v1035, %v1031
        %v1260 = vpack.c.b16 %v1040, %v1036
        %v1261 = vpack.c.b16 %v1041, %v1037
        %v1262 = vpack.c.b16 %v1042, %v1038
        %v1263 = vpack.c.b16 %v1043, %v1039
        %v1264 = vpack.c.b16 %v1048, %v1044
        %v1265 = vpack.c.b16 %v1049, %v1045
        %v1266 = vpack.c.b16 %v1050, %v1046
        %v1267 = vpack.c.b16 %v1051, %v1047
        %v1268 = vpack.c.b16 %v1056, %v1052
        %v1269 = vpack.c.b16 %v1057, %v1053
        %v1270 = vpack.c.b16 %v1058, %v1054
        %v1271 = vpack.c.b16 %v1059, %v1055
        %v1272 = vpack.c.b16 %v1064, %v1060
        %v1273 = vpack.c.b16 %v1065, %v1061
        %v1274 = vpack.c.b16 %v1066, %v1062
        %v1275 = vpack.c.b16 %v1067, %v1063
        %v1276 = vpack.c.b16 %v1072, %v1068
        %v1277 = vpack.c.b16 %v1073, %v1069
        %v1278 = vpack.c.b16 %v1074, %v1070
        %v1279 = vpack.c.b16 %v1075, %v1071
        %v1280 = vpack.c.b16 %v1080, %v1076
        %v1281 = vpack.c.b16 %v1081, %v1077
        %v1282 = vpack.c.b16 %v1082, %v1078
        %v1283 = vpack.c.b16 %v1083, %v1079
        %v1284 = vpack.c.b16 %v1088, %v1084
        %v1285 = vpack.c.b16 %v1089, %v1085
        %v1286 = vpack.c.b16 %v1090, %v1086
        %v1287 = vpack.c.b16 %v1091, %v1087
        %v1288 = vpack.c.b16 %v1096, %v1092
        %v1289 = vpack.c.b16 %v1097, %v1093
        %v1290 = vpack.c.b16 %v1098, %v1094
        %v1291 = vpack.c.b16 %v1099, %v1095
        %v1292 = vpack.c.b16 %v1104, %v1100
        %v1293 = vpack.c.b16 %v1105, %v1101
        %v1294 = vpack.c.b16 %v1106, %v1102
        %v1295 = vpack.c.b16 %v1107, %v1103
        %v1296 = vpack.c.b16 %v1112, %v1108
        %v1297 = vpack.c.b16 %v1113, %v1109
        %v1298 = vpack.c.b16 %v1114, %v1110
        %v1299 = vpack.c.b16 %v1115, %v1111
        %v1300 = vpack.c.b16 %v1120, %v1116
        %v1301 = vpack.c.b16 %v1121, %v1117
        %v1302 = vpack.c.b16 %v1122, %v1118
        %v1303 = vpack.c.b16 %v1123, %v1119
        %v1304 = vpack.c.b16 %v1128, %v1124
        %v1305 = vpack.c.b16 %v1129, %v1125
        %v1306 = vpack.c.b16 %v1130, %v1126
        %v1307 = vpack.c.b16 %v1131, %v1127
        %v1308 = vpack.c.b16 %v1136, %v1132
        %v1309 = vpack.c.b16 %v1137, %v1133
        %v1310 = vpack.c.b16 %v1138, %v1134
        %v1311 = vpack.c.b16 %v1139, %v1135
        %v1312 = vpack.c.b16 %v1144, %v1140
        %v1313 = vpack.c.b16 %v1145, %v1141
        %v1314 = vpack.c.b16 %v1146, %v1142
        %v1315 = vpack.c.b16 %v1147, %v1143
        %v1316 = vpack.c.b16 %v1152, %v1148
        %v1317 = vpack.c.b16 %v1153, %v1149
        %v1318 = vpack.c.b16 %v1154, %v1150
        %v1319 = vpack.c.b16 %v1155, %v1151
        %v1320 = vpack.c.b16 %v1160, %v1156
        %v1321 = vpack.c.b16 %v1161, %v1157
        %v1322 = vpack.c.b16 %v1162, %v1158
        %v1323 = vpack.c.b16 %v1163, %v1159
        %v1324 = vpack.c.b16 %v1168, %v1164
        %v1325 = vpack.c.b16 %v1169, %v1165
        %v1326 = vpack.c.b16 %v1170, %v1166
        %v1327 = vpack.c.b16 %v1171, %v1167
        %v1328 = vpack.c.b16 %v1176, %v1172
        %v1329 = vpack.c.b16 %v1177, %v1173
        %v1330 = vpack.c.b16 %v1178, %v1174
        %v1331 = vpack.c.b16 %v1179, %v1175
        %v1332 = vpack.c.b16 %v1184, %v1180
        %v1333 = vpack.c.b16 %v1185, %v1181
        %v1334 = vpack.c.b16 %v1186, %v1182
        %v1335 = vpack.c.b16 %v1187, %v1183
        %v1336 = vpack.c.b16 %v1192, %v1188
        %v1337 = vpack.c.b16 %v1193, %v1189
        %v1338 = vpack.c.b16 %v1194, %v1190
        %v1339 = vpack.c.b16 %v1195, %v1191
        %v1340 = vpack.c.b16 %v1200, %v1196
        %v1341 = vpack.c.b16 %v1201, %v1197
        %v1342 = vpack.c.b16 %v1202, %v1198
        %v1343 = vpack.c.b16 %v1203, %v1199
        %v1344 = vpack.c.b16 %v1208, %v1204
        %v1345 = vpack.c.b16 %v1209, %v1205
        %v1346 = vpack.c.b16 %v1210, %v1206
        %v1347 = vpack.c.b16 %v1211, %v1207
        %v1348 = vpack.c.b16 %v1216, %v1212
        %v1349 = vpack.c.b16 %v1217, %v1213
        %v1350 = vpack.c.b16 %v1218, %v1214
        %v1351 = vpack.c.b16 %v1219, %v1215
        %v1352 = vpack.c.b16 %v1224, %v1220
        %v1353 = vpack.c.b16 %v1225, %v1221
        %v1354 = vpack.c.b16 %v1226, %v1222
        %v1355 = vpack.c.b16 %v1227, %v1223
        %1484 = vmatprep.subr.bf16.mxu0 %v1229
        %1485 = vmatpush1.bf16.msra.mxu0 %v1228
        %1486 = vmatprep.subr.bf16.mxu0 %v1233
        %1487 = vmatpush1.bf16.msra.mxu0 %v1232
        %1488 = vmatprep.subr.bf16.mxu0 %v1237
        %1489 = vmatpush1.bf16.msra.mxu0 %v1236
        %1490 = vmatprep.subr.bf16.mxu0 %v1241
        %1491 = vmatpush1.bf16.msra.mxu0 %v1240
        %1492 = vmatprep.subr.bf16.mxu0 %v1245
        %1493 = vmatpush1.bf16.msra.mxu0 %v1244
        %1494 = vmatprep.subr.bf16.mxu0 %v1249
        %1495 = vmatpush1.bf16.msra.mxu0 %v1248
        %1496 = vmatprep.subr.bf16.mxu0 %v1253
        %1497 = vmatpush1.bf16.msra.mxu0 %v1252
        %1498 = vmatprep.subr.bf16.mxu0 %v1257
        %1499 = vmatpush1.bf16.msra.mxu0 %v1256
        %1500 = vmatprep.subr.bf16.mxu0 %v1261
        %1501 = vmatpush1.bf16.msra.mxu0 %v1260
        %1502 = vmatprep.subr.bf16.mxu0 %v1265
        %1503 = vmatpush1.bf16.msra.mxu0 %v1264
        %1504 = vmatprep.subr.bf16.mxu0 %v1269
        %1505 = vmatpush1.bf16.msra.mxu0 %v1268
        %1506 = vmatprep.subr.bf16.mxu0 %v1273
        %1507 = vmatpush1.bf16.msra.mxu0 %v1272
        %1508 = vmatprep.subr.bf16.mxu0 %v1277
        %1509 = vmatpush1.bf16.msra.mxu0 %v1276
        %1510 = vmatprep.subr.bf16.mxu0 %v1281
        %1511 = vmatpush1.bf16.msra.mxu0 %v1280
        %1512 = vmatprep.subr.bf16.mxu0 %v1285
        %1513 = vmatpush1.bf16.msra.mxu0 %v1284
        %1514 = vmatprep.subr.bf16.mxu0 %v1289
        %1515 = vmatpush1.bf16.msra.mxu0 %v1288
        %1516 = vmatprep.mubr.bf16.mxu0 %v691
        %1517 = vmatmul.mubr.bf16.gmra.mrb[0].mxu0 %v690
        %v1518 = vpop.f32.mrb[0].mxu0
        %v1519 = vadd.f32 %v827, %v1518
        %v1520 = vpop.f32.mrb[0].mxu0
        %v1521 = vadd.f32 %v831, %v1520
        %v1522 = vpop.f32.mrb[0].mxu0
        %v1523 = vpop.f32.mrb[0].mxu0
        %1524 = vdwg.mxu0
        %1525 = vmatprep.subr.bf16.mxu0 %v1293
        %1526 = vmatpush1.bf16.msra.mxu0 %v1292
        %1527 = vmatprep.subr.bf16.mxu0 %v1297
        %1528 = vmatpush1.bf16.msra.mxu0 %v1296
        %1529 = vmatprep.subr.bf16.mxu0 %v1301
        %1530 = vmatpush1.bf16.msra.mxu0 %v1300
        %1531 = vmatprep.subr.bf16.mxu0 %v1305
        %1532 = vmatpush1.bf16.msra.mxu0 %v1304
        %1533 = vmatprep.subr.bf16.mxu0 %v1309
        %1534 = vmatpush1.bf16.msra.mxu0 %v1308
        %1535 = vmatprep.subr.bf16.mxu0 %v1313
        %1536 = vmatpush1.bf16.msra.mxu0 %v1312
        %1537 = vmatprep.subr.bf16.mxu0 %v1317
        %1538 = vmatpush1.bf16.msra.mxu0 %v1316
        %1539 = vmatprep.subr.bf16.mxu0 %v1321
        %1540 = vmatpush1.bf16.msra.mxu0 %v1320
        %1541 = vmatprep.subr.bf16.mxu0 %v1325
        %1542 = vmatpush1.bf16.msra.mxu0 %v1324
        %1543 = vmatprep.subr.bf16.mxu0 %v1329
        %1544 = vmatpush1.bf16.msra.mxu0 %v1328
        %1545 = vmatprep.subr.bf16.mxu0 %v1333
        %1546 = vmatpush1.bf16.msra.mxu0 %v1332
        %1547 = vmatprep.subr.bf16.mxu0 %v1337
        %1548 = vmatpush1.bf16.msra.mxu0 %v1336
        %1549 = vmatprep.subr.bf16.mxu0 %v1341
        %1550 = vmatpush1.bf16.msra.mxu0 %v1340
        %1551 = vmatprep.subr.bf16.mxu0 %v1345
        %1552 = vmatpush1.bf16.msra.mxu0 %v1344
        %1553 = vmatprep.subr.bf16.mxu0 %v1349
        %1554 = vmatpush1.bf16.msra.mxu0 %v1348
        %1555 = vmatprep.subr.bf16.mxu0 %v1353
        %1556 = vmatpush1.bf16.msra.mxu0 %v1352
        %1557 = vmatprep.mubr.bf16.mxu0 %v693
        %1558 = vmatmul.mubr.bf16.gmra.mrb[0].mxu0 %v692
        %v1559 = vpop.f32.mrb[0].mxu0
        %v1560 = vadd.f32 %v1519, %v1559
        %v1561 = vpop.f32.mrb[0].mxu0
        %v1562 = vadd.f32 %v1521, %v1561
        %v1563 = vpop.f32.mrb[0].mxu0
        %v1564 = vpop.f32.mrb[0].mxu0
        %1565 = vdwg.mxu0
        %1566 = vmatprep.subr.bf16.mxu0 %v1231
        %1567 = vmatpush1.bf16.msra.mxu0 %v1230
        %1568 = vmatprep.subr.bf16.mxu0 %v1235
        %1569 = vmatpush1.bf16.msra.mxu0 %v1234
        %1570 = vmatprep.subr.bf16.mxu0 %v1239
        %1571 = vmatpush1.bf16.msra.mxu0 %v1238
        %1572 = vmatprep.subr.bf16.mxu0 %v1243
        %1573 = vmatpush1.bf16.msra.mxu0 %v1242
        %1574 = vmatprep.subr.bf16.mxu0 %v1247
        %1575 = vmatpush1.bf16.msra.mxu0 %v1246
        %1576 = vmatprep.subr.bf16.mxu0 %v1251
        %1577 = vmatpush1.bf16.msra.mxu0 %v1250
        %1578 = vmatprep.subr.bf16.mxu0 %v1255
        %1579 = vmatpush1.bf16.msra.mxu0 %v1254
        %1580 = vmatprep.subr.bf16.mxu0 %v1259
        %1581 = vmatpush1.bf16.msra.mxu0 %v1258
        %1582 = vmatprep.subr.bf16.mxu0 %v1263
        %1583 = vmatpush1.bf16.msra.mxu0 %v1262
        %1584 = vmatprep.subr.bf16.mxu0 %v1267
        %1585 = vmatpush1.bf16.msra.mxu0 %v1266
        %1586 = vmatprep.subr.bf16.mxu0 %v1271
        %1587 = vmatpush1.bf16.msra.mxu0 %v1270
        %1588 = vmatprep.subr.bf16.mxu0 %v1275
        %1589 = vmatpush1.bf16.msra.mxu0 %v1274
        %1590 = vmatprep.subr.bf16.mxu0 %v1279
        %1591 = vmatpush1.bf16.msra.mxu0 %v1278
        %1592 = vmatprep.subr.bf16.mxu0 %v1283
        %1593 = vmatpush1.bf16.msra.mxu0 %v1282
        %1594 = vmatprep.subr.bf16.mxu0 %v1287
        %1595 = vmatpush1.bf16.msra.mxu0 %v1286
        %1596 = vmatprep.subr.bf16.mxu0 %v1291
        %1597 = vmatpush1.bf16.msra.mxu0 %v1290
        %1598 = vmatprep.mubr.bf16.mxu0 %v691
        %1599 = vmatmul.mubr.bf16.gmra.mrb[0].mxu0 %v690
        %v1600 = vpop.f32.mrb[0].mxu0
        %v1601 = vadd.f32 %v835, %v1600
        %v1602 = vpop.f32.mrb[0].mxu0
        %v1603 = vadd.f32 %v839, %v1602
        %v1604 = vpop.f32.mrb[0].mxu0
        %v1605 = vpop.f32.mrb[0].mxu0
        %1606 = vdwg.mxu0
        %1607 = vmatprep.subr.bf16.mxu0 %v1295
        %1608 = vmatpush1.bf16.msra.mxu0 %v1294
        %1609 = vmatprep.subr.bf16.mxu0 %v1299
        %1610 = vmatpush1.bf16.msra.mxu0 %v1298
        %1611 = vmatprep.subr.bf16.mxu0 %v1303
        %1612 = vmatpush1.bf16.msra.mxu0 %v1302
        %1613 = vmatprep.subr.bf16.mxu0 %v1307
        %1614 = vmatpush1.bf16.msra.mxu0 %v1306
        %1615 = vmatprep.subr.bf16.mxu0 %v1311
        %1616 = vmatpush1.bf16.msra.mxu0 %v1310
        %1617 = vmatprep.subr.bf16.mxu0 %v1315
        %1618 = vmatpush1.bf16.msra.mxu0 %v1314
        %1619 = vmatprep.subr.bf16.mxu0 %v1319
        %1620 = vmatpush1.bf16.msra.mxu0 %v1318
        %1621 = vmatprep.subr.bf16.mxu0 %v1323
        %1622 = vmatpush1.bf16.msra.mxu0 %v1322
        %1623 = vmatprep.subr.bf16.mxu0 %v1327
        %1624 = vmatpush1.bf16.msra.mxu0 %v1326
        %1625 = vmatprep.subr.bf16.mxu0 %v1331
        %1626 = vmatpush1.bf16.msra.mxu0 %v1330
        %1627 = vmatprep.subr.bf16.mxu0 %v1335
        %1628 = vmatpush1.bf16.msra.mxu0 %v1334
        %1629 = vmatprep.subr.bf16.mxu0 %v1339
        %1630 = vmatpush1.bf16.msra.mxu0 %v1338
        %1631 = vmatprep.subr.bf16.mxu0 %v1343
        %1632 = vmatpush1.bf16.msra.mxu0 %v1342
        %1633 = vmatprep.subr.bf16.mxu0 %v1347
        %1634 = vmatpush1.bf16.msra.mxu0 %v1346
        %1635 = vmatprep.subr.bf16.mxu0 %v1351
        %1636 = vmatpush1.bf16.msra.mxu0 %v1350
        %1637 = vmatprep.subr.bf16.mxu0 %v1355
        %1638 = vmatpush1.bf16.msra.mxu0 %v1354
        %1639 = vmatprep.mubr.bf16.mxu0 %v693
        %1640 = vmatmul.mubr.bf16.gmra.mrb[0].mxu0 %v692
        %v1641 = vpop.f32.mrb[0].mxu0
        %v1642 = vadd.f32 %v1601, %v1641
        %v1643 = vpop.f32.mrb[0].mxu0
        %v1644 = vadd.f32 %v1603, %v1643
        %v1645 = vpop.f32.mrb[0].mxu0
        %v1646 = vpop.f32.mrb[0].mxu0
        %1647 = vdwg.mxu0
        %v1648 = vmax.f32 %v1560, 0.0
        %v1649 = vmax.f32 %v1562, 0.0
        %v1650 = vmax.f32 %v1642, 0.0
        %v1651 = vmax.f32 %v1644, 0.0
        %v1652 = vpack.c.bf16 %v1648, %v1648
        %v1653 = vpack.c.bf16 %v1649, %v1649
        %v1654 = vpack.c.bf16 %v1650, %v1650
        %v1655 = vpack.c.bf16 %v1651, %v1651
        %v1656 = vld [vmem:[%s429] sm:$0xff]
        %v1657 = vld [vmem:[%s429 + $0x8] sm:$0xff]
        %v1658 = vld [vmem:[%s429 + $0x10] sm:$0xff]
        %v1659 = vld [vmem:[%s429 + $0x18] sm:$0xff]
        %v1660 = vld [vmem:[%s429 + $0x20] sm:$0xff]
        %v1661 = vld [vmem:[%s429 + $0x28] sm:$0xff]
        %v1662 = vld [vmem:[%s429 + $0x30] sm:$0xff]
        %v1663 = vld [vmem:[%s429 + $0x38] sm:$0xff]
        %v1664 = vld [vmem:[%s429 + $0x40] sm:$0xff]
        %v1665 = vld [vmem:[%s429 + $0x48] sm:$0xff]
        %v1666 = vld [vmem:[%s429 + $0x50] sm:$0xff]
        %v1667 = vld [vmem:[%s429 + $0x58] sm:$0xff]
        %v1668 = vld [vmem:[%s429 + $0x60] sm:$0xff]
        %v1669 = vld [vmem:[%s429 + $0x68] sm:$0xff]
        %v1670 = vld [vmem:[%s429 + $0x70] sm:$0xff]
        %v1671 = vld [vmem:[%s429 + $0x78] sm:$0xff]
        %v1672 = vld [vmem:[%s429 + $0x80] sm:$0xff]
        %v1673 = vld [vmem:[%s429 + $0x88] sm:$0xff]
        %v1674 = vld [vmem:[%s429 + $0x90] sm:$0xff]
        %v1675 = vld [vmem:[%s429 + $0x98] sm:$0xff]
        %v1676 = vld [vmem:[%s429 + $0xa0] sm:$0xff]
        %v1677 = vld [vmem:[%s429 + $0xa8] sm:$0xff]
        %v1678 = vld [vmem:[%s429 + $0xb0] sm:$0xff]
        %v1679 = vld [vmem:[%s429 + $0xb8] sm:$0xff]
        %v1680 = vld [vmem:[%s429 + $0xc0] sm:$0xff]
        %v1681 = vld [vmem:[%s429 + $0xc8] sm:$0xff]
        %v1682 = vld [vmem:[%s429 + $0xd0] sm:$0xff]
        %v1683 = vld [vmem:[%s429 + $0xd8] sm:$0xff]
        %v1684 = vld [vmem:[%s429 + $0xe0] sm:$0xff]
        %v1685 = vld [vmem:[%s429 + $0xe8] sm:$0xff]
        %v1686 = vld [vmem:[%s429 + $0xf0] sm:$0xff]
        %v1687 = vld [vmem:[%s429 + $0xf8] sm:$0xff]
        %v1688 = vld [vmem:[%s429 + $0x100] sm:$0xff]
        %v1689 = vld [vmem:[%s429 + $0x108] sm:$0xff]
        %v1690 = vld [vmem:[%s429 + $0x110] sm:$0xff]
        %v1691 = vld [vmem:[%s429 + $0x118] sm:$0xff]
        %v1692 = vld [vmem:[%s429 + $0x120] sm:$0xff]
        %v1693 = vld [vmem:[%s429 + $0x128] sm:$0xff]
        %v1694 = vld [vmem:[%s429 + $0x130] sm:$0xff]
        %v1695 = vld [vmem:[%s429 + $0x138] sm:$0xff]
        %v1696 = vld [vmem:[%s429 + $0x140] sm:$0xff]
        %v1697 = vld [vmem:[%s429 + $0x148] sm:$0xff]
        %v1698 = vld [vmem:[%s429 + $0x150] sm:$0xff]
        %v1699 = vld [vmem:[%s429 + $0x158] sm:$0xff]
        %v1700 = vld [vmem:[%s429 + $0x160] sm:$0xff]
        %v1701 = vld [vmem:[%s429 + $0x168] sm:$0xff]
        %v1702 = vld [vmem:[%s429 + $0x170] sm:$0xff]
        %v1703 = vld [vmem:[%s429 + $0x178] sm:$0xff]
        %v1704 = vld [vmem:[%s429 + $0x180] sm:$0xff]
        %v1705 = vld [vmem:[%s429 + $0x188] sm:$0xff]
        %v1706 = vld [vmem:[%s429 + $0x190] sm:$0xff]
        %v1707 = vld [vmem:[%s429 + $0x198] sm:$0xff]
        %v1708 = vld [vmem:[%s429 + $0x1a0] sm:$0xff]
        %v1709 = vld [vmem:[%s429 + $0x1a8] sm:$0xff]
        %v1710 = vld [vmem:[%s429 + $0x1b0] sm:$0xff]
        %v1711 = vld [vmem:[%s429 + $0x1b8] sm:$0xff]
        %v1712 = vld [vmem:[%s429 + $0x1c0] sm:$0xff]
        %v1713 = vld [vmem:[%s429 + $0x1c8] sm:$0xff]
        %v1714 = vld [vmem:[%s429 + $0x1d0] sm:$0xff]
        %v1715 = vld [vmem:[%s429 + $0x1d8] sm:$0xff]
        %v1716 = vld [vmem:[%s429 + $0x1e0] sm:$0xff]
        %v1717 = vld [vmem:[%s429 + $0x1e8] sm:$0xff]
        %v1718 = vld [vmem:[%s429 + $0x1f0] sm:$0xff]
        %v1719 = vld [vmem:[%s429 + $0x1f8] sm:$0xff]
        %v1720 = vld [vmem:[%s429 + $0x200] sm:$0xff]
        %v1721 = vld [vmem:[%s429 + $0x208] sm:$0xff]
        %v1722 = vld [vmem:[%s429 + $0x210] sm:$0xff]
        %v1723 = vld [vmem:[%s429 + $0x218] sm:$0xff]
        %v1724 = vld [vmem:[%s429 + $0x220] sm:$0xff]
        %v1725 = vld [vmem:[%s429 + $0x228] sm:$0xff]
        %v1726 = vld [vmem:[%s429 + $0x230] sm:$0xff]
        %v1727 = vld [vmem:[%s429 + $0x238] sm:$0xff]
        %v1728 = vld [vmem:[%s429 + $0x240] sm:$0xff]
        %v1729 = vld [vmem:[%s429 + $0x248] sm:$0xff]
        %v1730 = vld [vmem:[%s429 + $0x250] sm:$0xff]
        %v1731 = vld [vmem:[%s429 + $0x258] sm:$0xff]
        %v1732 = vld [vmem:[%s429 + $0x260] sm:$0xff]
        %v1733 = vld [vmem:[%s429 + $0x268] sm:$0xff]
        %v1734 = vld [vmem:[%s429 + $0x270] sm:$0xff]
        %v1735 = vld [vmem:[%s429 + $0x278] sm:$0xff]
        %v1736 = vld [vmem:[%s429 + $0x280] sm:$0xff]
        %v1737 = vld [vmem:[%s429 + $0x288] sm:$0xff]
        %v1738 = vld [vmem:[%s429 + $0x290] sm:$0xff]
        %v1739 = vld [vmem:[%s429 + $0x298] sm:$0xff]
        %v1740 = vld [vmem:[%s429 + $0x2a0] sm:$0xff]
        %v1741 = vld [vmem:[%s429 + $0x2a8] sm:$0xff]
        %v1742 = vld [vmem:[%s429 + $0x2b0] sm:$0xff]
        %v1743 = vld [vmem:[%s429 + $0x2b8] sm:$0xff]
        %v1744 = vld [vmem:[%s429 + $0x2c0] sm:$0xff]
        %v1745 = vld [vmem:[%s429 + $0x2c8] sm:$0xff]
        %v1746 = vld [vmem:[%s429 + $0x2d0] sm:$0xff]
        %v1747 = vld [vmem:[%s429 + $0x2d8] sm:$0xff]
        %v1748 = vld [vmem:[%s429 + $0x2e0] sm:$0xff]
        %v1749 = vld [vmem:[%s429 + $0x2e8] sm:$0xff]
        %v1750 = vld [vmem:[%s429 + $0x2f0] sm:$0xff]
        %v1751 = vld [vmem:[%s429 + $0x2f8] sm:$0xff]
        %v1752 = vld [vmem:[%s429 + $0x300] sm:$0xff]
        %v1753 = vld [vmem:[%s429 + $0x308] sm:$0xff]
        %v1754 = vld [vmem:[%s429 + $0x310] sm:$0xff]
        %v1755 = vld [vmem:[%s429 + $0x318] sm:$0xff]
        %v1756 = vld [vmem:[%s429 + $0x320] sm:$0xff]
        %v1757 = vld [vmem:[%s429 + $0x328] sm:$0xff]
        %v1758 = vld [vmem:[%s429 + $0x330] sm:$0xff]
        %v1759 = vld [vmem:[%s429 + $0x338] sm:$0xff]
        %v1760 = vld [vmem:[%s429 + $0x340] sm:$0xff]
        %v1761 = vld [vmem:[%s429 + $0x348] sm:$0xff]
        %v1762 = vld [vmem:[%s429 + $0x350] sm:$0xff]
        %v1763 = vld [vmem:[%s429 + $0x358] sm:$0xff]
        %v1764 = vld [vmem:[%s429 + $0x360] sm:$0xff]
        %v1765 = vld [vmem:[%s429 + $0x368] sm:$0xff]
        %v1766 = vld [vmem:[%s429 + $0x370] sm:$0xff]
        %v1767 = vld [vmem:[%s429 + $0x378] sm:$0xff]
        %v1768 = vld [vmem:[%s429 + $0x380] sm:$0xff]
        %v1769 = vld [vmem:[%s429 + $0x388] sm:$0xff]
        %v1770 = vld [vmem:[%s429 + $0x390] sm:$0xff]
        %v1771 = vld [vmem:[%s429 + $0x398] sm:$0xff]
        %v1772 = vld [vmem:[%s429 + $0x3a0] sm:$0xff]
        %v1773 = vld [vmem:[%s429 + $0x3a8] sm:$0xff]
        %v1774 = vld [vmem:[%s429 + $0x3b0] sm:$0xff]
        %v1775 = vld [vmem:[%s429 + $0x3b8] sm:$0xff]
        %v1776 = vld [vmem:[%s429 + $0x3c0] sm:$0xff]
        %v1777 = vld [vmem:[%s429 + $0x3c8] sm:$0xff]
        %v1778 = vld [vmem:[%s429 + $0x3d0] sm:$0xff]
        %v1779 = vld [vmem:[%s429 + $0x3d8] sm:$0xff]
        %v1780 = vld [vmem:[%s429 + $0x3e0] sm:$0xff]
        %v1781 = vld [vmem:[%s429 + $0x3e8] sm:$0xff]
        %v1782 = vld [vmem:[%s429 + $0x3f0] sm:$0xff]
        %v1783 = vld [vmem:[%s429 + $0x3f8] sm:$0xff]
        %v1784 = vld [vmem:[%s518] sm:$0xf]
        %v1786 = vlaneseq
        %v1787 = vshrl.u32 %v1786, 7
        %v1788 = vsub.s32 0, %v1787
        %v1789 = vrot.slane %v1784, %v1788
        %v1790 = vlaneseq
        %v1791 = vshrl.u32 %v1790, 7
        %v1792 = vsub.s32 1, %v1791
        %v1793 = vrot.slane %v1784, %v1792
        %v1794 = vlaneseq
        %v1795 = vshrl.u32 %v1794, 7
        %v1796 = vsub.s32 2, %v1795
        %v1797 = vrot.slane %v1784, %v1796
        %v1798 = vlaneseq
        %v1799 = vshrl.u32 %v1798, 7
        %v1800 = vsub.s32 3, %v1799
        %v1801 = vrot.slane %v1784, %v1800
        %v1934 = vunpack.c.l.b16 %v1656
        %v1935 = vunpack.c.h.b16 %v1656
        %v1936 = vunpack.c.l.b16 %v1657
        %v1937 = vunpack.c.h.b16 %v1657
        %v1938 = vunpack.c.l.b16 %v1658
        %v1939 = vunpack.c.h.b16 %v1658
        %v1940 = vunpack.c.l.b16 %v1659
        %v1941 = vunpack.c.h.b16 %v1659
        %v1942 = vunpack.c.l.b16 %v1660
        %v1943 = vunpack.c.h.b16 %v1660
        %v1944 = vunpack.c.l.b16 %v1661
        %v1945 = vunpack.c.h.b16 %v1661
        %v1946 = vunpack.c.l.b16 %v1662
        %v1947 = vunpack.c.h.b16 %v1662
        %v1948 = vunpack.c.l.b16 %v1663
        %v1949 = vunpack.c.h.b16 %v1663
        %v1950 = vunpack.c.l.b16 %v1664
        %v1951 = vunpack.c.h.b16 %v1664
        %v1952 = vunpack.c.l.b16 %v1665
        %v1953 = vunpack.c.h.b16 %v1665
        %v1954 = vunpack.c.l.b16 %v1666
        %v1955 = vunpack.c.h.b16 %v1666
        %v1956 = vunpack.c.l.b16 %v1667
        %v1957 = vunpack.c.h.b16 %v1667
        %v1958 = vunpack.c.l.b16 %v1668
        %v1959 = vunpack.c.h.b16 %v1668
        %v1960 = vunpack.c.l.b16 %v1669
        %v1961 = vunpack.c.h.b16 %v1669
        %v1962 = vunpack.c.l.b16 %v1670
        %v1963 = vunpack.c.h.b16 %v1670
        %v1964 = vunpack.c.l.b16 %v1671
        %v1965 = vunpack.c.h.b16 %v1671
        %v1966 = vunpack.c.l.b16 %v1672
        %v1967 = vunpack.c.h.b16 %v1672
        %v1968 = vunpack.c.l.b16 %v1673
        %v1969 = vunpack.c.h.b16 %v1673
        %v1970 = vunpack.c.l.b16 %v1674
        %v1971 = vunpack.c.h.b16 %v1674
        %v1972 = vunpack.c.l.b16 %v1675
        %v1973 = vunpack.c.h.b16 %v1675
        %v1974 = vunpack.c.l.b16 %v1676
        %v1975 = vunpack.c.h.b16 %v1676
        %v1976 = vunpack.c.l.b16 %v1677
        %v1977 = vunpack.c.h.b16 %v1677
        %v1978 = vunpack.c.l.b16 %v1678
        %v1979 = vunpack.c.h.b16 %v1678
        %v1980 = vunpack.c.l.b16 %v1679
        %v1981 = vunpack.c.h.b16 %v1679
        %v1982 = vunpack.c.l.b16 %v1680
        %v1983 = vunpack.c.h.b16 %v1680
        %v1984 = vunpack.c.l.b16 %v1681
        %v1985 = vunpack.c.h.b16 %v1681
        %v1986 = vunpack.c.l.b16 %v1682
        %v1987 = vunpack.c.h.b16 %v1682
        %v1988 = vunpack.c.l.b16 %v1683
        %v1989 = vunpack.c.h.b16 %v1683
        %v1990 = vunpack.c.l.b16 %v1684
        %v1991 = vunpack.c.h.b16 %v1684
        %v1992 = vunpack.c.l.b16 %v1685
        %v1993 = vunpack.c.h.b16 %v1685
        %v1994 = vunpack.c.l.b16 %v1686
        %v1995 = vunpack.c.h.b16 %v1686
        %v1996 = vunpack.c.l.b16 %v1687
        %v1997 = vunpack.c.h.b16 %v1687
        %v1998 = vunpack.c.l.b16 %v1688
        %v1999 = vunpack.c.h.b16 %v1688
        %v2000 = vunpack.c.l.b16 %v1689
        %v2001 = vunpack.c.h.b16 %v1689
        %v2002 = vunpack.c.l.b16 %v1690
        %v2003 = vunpack.c.h.b16 %v1690
        %v2004 = vunpack.c.l.b16 %v1691
        %v2005 = vunpack.c.h.b16 %v1691
        %v2006 = vunpack.c.l.b16 %v1692
        %v2007 = vunpack.c.h.b16 %v1692
        %v2008 = vunpack.c.l.b16 %v1693
        %v2009 = vunpack.c.h.b16 %v1693
        %v2010 = vunpack.c.l.b16 %v1694
        %v2011 = vunpack.c.h.b16 %v1694
        %v2012 = vunpack.c.l.b16 %v1695
        %v2013 = vunpack.c.h.b16 %v1695
        %v2014 = vunpack.c.l.b16 %v1696
        %v2015 = vunpack.c.h.b16 %v1696
        %v2016 = vunpack.c.l.b16 %v1697
        %v2017 = vunpack.c.h.b16 %v1697
        %v2018 = vunpack.c.l.b16 %v1698
        %v2019 = vunpack.c.h.b16 %v1698
        %v2020 = vunpack.c.l.b16 %v1699
        %v2021 = vunpack.c.h.b16 %v1699
        %v2022 = vunpack.c.l.b16 %v1700
        %v2023 = vunpack.c.h.b16 %v1700
        %v2024 = vunpack.c.l.b16 %v1701
        %v2025 = vunpack.c.h.b16 %v1701
        %v2026 = vunpack.c.l.b16 %v1702
        %v2027 = vunpack.c.h.b16 %v1702
        %v2028 = vunpack.c.l.b16 %v1703
        %v2029 = vunpack.c.h.b16 %v1703
        %v2030 = vunpack.c.l.b16 %v1704
        %v2031 = vunpack.c.h.b16 %v1704
        %v2032 = vunpack.c.l.b16 %v1705
        %v2033 = vunpack.c.h.b16 %v1705
        %v2034 = vunpack.c.l.b16 %v1706
        %v2035 = vunpack.c.h.b16 %v1706
        %v2036 = vunpack.c.l.b16 %v1707
        %v2037 = vunpack.c.h.b16 %v1707
        %v2038 = vunpack.c.l.b16 %v1708
        %v2039 = vunpack.c.h.b16 %v1708
        %v2040 = vunpack.c.l.b16 %v1709
        %v2041 = vunpack.c.h.b16 %v1709
        %v2042 = vunpack.c.l.b16 %v1710
        %v2043 = vunpack.c.h.b16 %v1710
        %v2044 = vunpack.c.l.b16 %v1711
        %v2045 = vunpack.c.h.b16 %v1711
        %v2046 = vunpack.c.l.b16 %v1712
        %v2047 = vunpack.c.h.b16 %v1712
        %v2048 = vunpack.c.l.b16 %v1713
        %v2049 = vunpack.c.h.b16 %v1713
        %v2050 = vunpack.c.l.b16 %v1714
        %v2051 = vunpack.c.h.b16 %v1714
        %v2052 = vunpack.c.l.b16 %v1715
        %v2053 = vunpack.c.h.b16 %v1715
        %v2054 = vunpack.c.l.b16 %v1716
        %v2055 = vunpack.c.h.b16 %v1716
        %v2056 = vunpack.c.l.b16 %v1717
        %v2057 = vunpack.c.h.b16 %v1717
        %v2058 = vunpack.c.l.b16 %v1718
        %v2059 = vunpack.c.h.b16 %v1718
        %v2060 = vunpack.c.l.b16 %v1719
        %v2061 = vunpack.c.h.b16 %v1719
        %v2062 = vunpack.c.l.b16 %v1720
        %v2063 = vunpack.c.h.b16 %v1720
        %v2064 = vunpack.c.l.b16 %v1721
        %v2065 = vunpack.c.h.b16 %v1721
        %v2066 = vunpack.c.l.b16 %v1722
        %v2067 = vunpack.c.h.b16 %v1722
        %v2068 = vunpack.c.l.b16 %v1723
        %v2069 = vunpack.c.h.b16 %v1723
        %v2070 = vunpack.c.l.b16 %v1724
        %v2071 = vunpack.c.h.b16 %v1724
        %v2072 = vunpack.c.l.b16 %v1725
        %v2073 = vunpack.c.h.b16 %v1725
        %v2074 = vunpack.c.l.b16 %v1726
        %v2075 = vunpack.c.h.b16 %v1726
        %v2076 = vunpack.c.l.b16 %v1727
        %v2077 = vunpack.c.h.b16 %v1727
        %v2078 = vunpack.c.l.b16 %v1728
        %v2079 = vunpack.c.h.b16 %v1728
        %v2080 = vunpack.c.l.b16 %v1729
        %v2081 = vunpack.c.h.b16 %v1729
        %v2082 = vunpack.c.l.b16 %v1730
        %v2083 = vunpack.c.h.b16 %v1730
        %v2084 = vunpack.c.l.b16 %v1731
        %v2085 = vunpack.c.h.b16 %v1731
        %v2086 = vunpack.c.l.b16 %v1732
        %v2087 = vunpack.c.h.b16 %v1732
        %v2088 = vunpack.c.l.b16 %v1733
        %v2089 = vunpack.c.h.b16 %v1733
        %v2090 = vunpack.c.l.b16 %v1734
        %v2091 = vunpack.c.h.b16 %v1734
        %v2092 = vunpack.c.l.b16 %v1735
        %v2093 = vunpack.c.h.b16 %v1735
        %v2094 = vunpack.c.l.b16 %v1736
        %v2095 = vunpack.c.h.b16 %v1736
        %v2096 = vunpack.c.l.b16 %v1737
        %v2097 = vunpack.c.h.b16 %v1737
        %v2098 = vunpack.c.l.b16 %v1738
        %v2099 = vunpack.c.h.b16 %v1738
        %v2100 = vunpack.c.l.b16 %v1739
        %v2101 = vunpack.c.h.b16 %v1739
        %v2102 = vunpack.c.l.b16 %v1740
        %v2103 = vunpack.c.h.b16 %v1740
        %v2104 = vunpack.c.l.b16 %v1741
        %v2105 = vunpack.c.h.b16 %v1741
        %v2106 = vunpack.c.l.b16 %v1742
        %v2107 = vunpack.c.h.b16 %v1742
        %v2108 = vunpack.c.l.b16 %v1743
        %v2109 = vunpack.c.h.b16 %v1743
        %v2110 = vunpack.c.l.b16 %v1744
        %v2111 = vunpack.c.h.b16 %v1744
        %v2112 = vunpack.c.l.b16 %v1745
        %v2113 = vunpack.c.h.b16 %v1745
        %v2114 = vunpack.c.l.b16 %v1746
        %v2115 = vunpack.c.h.b16 %v1746
        %v2116 = vunpack.c.l.b16 %v1747
        %v2117 = vunpack.c.h.b16 %v1747
        %v2118 = vunpack.c.l.b16 %v1748
        %v2119 = vunpack.c.h.b16 %v1748
        %v2120 = vunpack.c.l.b16 %v1749
        %v2121 = vunpack.c.h.b16 %v1749
        %v2122 = vunpack.c.l.b16 %v1750
        %v2123 = vunpack.c.h.b16 %v1750
        %v2124 = vunpack.c.l.b16 %v1751
        %v2125 = vunpack.c.h.b16 %v1751
        %v2126 = vunpack.c.l.b16 %v1752
        %v2127 = vunpack.c.h.b16 %v1752
        %v2128 = vunpack.c.l.b16 %v1753
        %v2129 = vunpack.c.h.b16 %v1753
        %v2130 = vunpack.c.l.b16 %v1754
        %v2131 = vunpack.c.h.b16 %v1754
        %v2132 = vunpack.c.l.b16 %v1755
        %v2133 = vunpack.c.h.b16 %v1755
        %v2134 = vunpack.c.l.b16 %v1756
        %v2135 = vunpack.c.h.b16 %v1756
        %v2136 = vunpack.c.l.b16 %v1757
        %v2137 = vunpack.c.h.b16 %v1757
        %v2138 = vunpack.c.l.b16 %v1758
        %v2139 = vunpack.c.h.b16 %v1758
        %v2140 = vunpack.c.l.b16 %v1759
        %v2141 = vunpack.c.h.b16 %v1759
        %v2142 = vunpack.c.l.b16 %v1760
        %v2143 = vunpack.c.h.b16 %v1760
        %v2144 = vunpack.c.l.b16 %v1761
        %v2145 = vunpack.c.h.b16 %v1761
        %v2146 = vunpack.c.l.b16 %v1762
        %v2147 = vunpack.c.h.b16 %v1762
        %v2148 = vunpack.c.l.b16 %v1763
        %v2149 = vunpack.c.h.b16 %v1763
        %v2150 = vunpack.c.l.b16 %v1764
        %v2151 = vunpack.c.h.b16 %v1764
        %v2152 = vunpack.c.l.b16 %v1765
        %v2153 = vunpack.c.h.b16 %v1765
        %v2154 = vunpack.c.l.b16 %v1766
        %v2155 = vunpack.c.h.b16 %v1766
        %v2156 = vunpack.c.l.b16 %v1767
        %v2157 = vunpack.c.h.b16 %v1767
        %v2158 = vunpack.c.l.b16 %v1768
        %v2159 = vunpack.c.h.b16 %v1768
        %v2160 = vunpack.c.l.b16 %v1769
        %v2161 = vunpack.c.h.b16 %v1769
        %v2162 = vunpack.c.l.b16 %v1770
        %v2163 = vunpack.c.h.b16 %v1770
        %v2164 = vunpack.c.l.b16 %v1771
        %v2165 = vunpack.c.h.b16 %v1771
        %v2166 = vunpack.c.l.b16 %v1772
        %v2167 = vunpack.c.h.b16 %v1772
        %v2168 = vunpack.c.l.b16 %v1773
        %v2169 = vunpack.c.h.b16 %v1773
        %v2170 = vunpack.c.l.b16 %v1774
        %v2171 = vunpack.c.h.b16 %v1774
        %v2172 = vunpack.c.l.b16 %v1775
        %v2173 = vunpack.c.h.b16 %v1775
        %v2174 = vunpack.c.l.b16 %v1776
        %v2175 = vunpack.c.h.b16 %v1776
        %v2176 = vunpack.c.l.b16 %v1777
        %v2177 = vunpack.c.h.b16 %v1777
        %v2178 = vunpack.c.l.b16 %v1778
        %v2179 = vunpack.c.h.b16 %v1778
        %v2180 = vunpack.c.l.b16 %v1779
        %v2181 = vunpack.c.h.b16 %v1779
        %v2182 = vunpack.c.l.b16 %v1780
        %v2183 = vunpack.c.h.b16 %v1780
        %v2184 = vunpack.c.l.b16 %v1781
        %v2185 = vunpack.c.h.b16 %v1781
        %v2186 = vunpack.c.l.b16 %v1782
        %v2187 = vunpack.c.h.b16 %v1782
        %v2188 = vunpack.c.l.b16 %v1783
        %v2189 = vunpack.c.h.b16 %v1783
        %v2190 = vpack.c.b16 %v1938, %v1934
        %v2191 = vpack.c.b16 %v1939, %v1935
        %v2192 = vpack.c.b16 %v1940, %v1936
        %v2193 = vpack.c.b16 %v1941, %v1937
        %v2194 = vpack.c.b16 %v1946, %v1942
        %v2195 = vpack.c.b16 %v1947, %v1943
        %v2196 = vpack.c.b16 %v1948, %v1944
        %v2197 = vpack.c.b16 %v1949, %v1945
        %v2198 = vpack.c.b16 %v1954, %v1950
        %v2199 = vpack.c.b16 %v1955, %v1951
        %v2200 = vpack.c.b16 %v1956, %v1952
        %v2201 = vpack.c.b16 %v1957, %v1953
        %v2202 = vpack.c.b16 %v1962, %v1958
        %v2203 = vpack.c.b16 %v1963, %v1959
        %v2204 = vpack.c.b16 %v1964, %v1960
        %v2205 = vpack.c.b16 %v1965, %v1961
        %v2206 = vpack.c.b16 %v1970, %v1966
        %v2207 = vpack.c.b16 %v1971, %v1967
        %v2208 = vpack.c.b16 %v1972, %v1968
        %v2209 = vpack.c.b16 %v1973, %v1969
        %v2210 = vpack.c.b16 %v1978, %v1974
        %v2211 = vpack.c.b16 %v1979, %v1975
        %v2212 = vpack.c.b16 %v1980, %v1976
        %v2213 = vpack.c.b16 %v1981, %v1977
        %v2214 = vpack.c.b16 %v1986, %v1982
        %v2215 = vpack.c.b16 %v1987, %v1983
        %v2216 = vpack.c.b16 %v1988, %v1984
        %v2217 = vpack.c.b16 %v1989, %v1985
        %v2218 = vpack.c.b16 %v1994, %v1990
        %v2219 = vpack.c.b16 %v1995, %v1991
        %v2220 = vpack.c.b16 %v1996, %v1992
        %v2221 = vpack.c.b16 %v1997, %v1993
        %v2222 = vpack.c.b16 %v2002, %v1998
        %v2223 = vpack.c.b16 %v2003, %v1999
        %v2224 = vpack.c.b16 %v2004, %v2000
        %v2225 = vpack.c.b16 %v2005, %v2001
        %v2226 = vpack.c.b16 %v2010, %v2006
        %v2227 = vpack.c.b16 %v2011, %v2007
        %v2228 = vpack.c.b16 %v2012, %v2008
        %v2229 = vpack.c.b16 %v2013, %v2009
        %v2230 = vpack.c.b16 %v2018, %v2014
        %v2231 = vpack.c.b16 %v2019, %v2015
        %v2232 = vpack.c.b16 %v2020, %v2016
        %v2233 = vpack.c.b16 %v2021, %v2017
        %v2234 = vpack.c.b16 %v2026, %v2022
        %v2235 = vpack.c.b16 %v2027, %v2023
        %v2236 = vpack.c.b16 %v2028, %v2024
        %v2237 = vpack.c.b16 %v2029, %v2025
        %v2238 = vpack.c.b16 %v2034, %v2030
        %v2239 = vpack.c.b16 %v2035, %v2031
        %v2240 = vpack.c.b16 %v2036, %v2032
        %v2241 = vpack.c.b16 %v2037, %v2033
        %v2242 = vpack.c.b16 %v2042, %v2038
        %v2243 = vpack.c.b16 %v2043, %v2039
        %v2244 = vpack.c.b16 %v2044, %v2040
        %v2245 = vpack.c.b16 %v2045, %v2041
        %v2246 = vpack.c.b16 %v2050, %v2046
        %v2247 = vpack.c.b16 %v2051, %v2047
        %v2248 = vpack.c.b16 %v2052, %v2048
        %v2249 = vpack.c.b16 %v2053, %v2049
        %v2250 = vpack.c.b16 %v2058, %v2054
        %v2251 = vpack.c.b16 %v2059, %v2055
        %v2252 = vpack.c.b16 %v2060, %v2056
        %v2253 = vpack.c.b16 %v2061, %v2057
        %v2254 = vpack.c.b16 %v2066, %v2062
        %v2255 = vpack.c.b16 %v2067, %v2063
        %v2256 = vpack.c.b16 %v2068, %v2064
        %v2257 = vpack.c.b16 %v2069, %v2065
        %v2258 = vpack.c.b16 %v2074, %v2070
        %v2259 = vpack.c.b16 %v2075, %v2071
        %v2260 = vpack.c.b16 %v2076, %v2072
        %v2261 = vpack.c.b16 %v2077, %v2073
        %v2262 = vpack.c.b16 %v2082, %v2078
        %v2263 = vpack.c.b16 %v2083, %v2079
        %v2264 = vpack.c.b16 %v2084, %v2080
        %v2265 = vpack.c.b16 %v2085, %v2081
        %v2266 = vpack.c.b16 %v2090, %v2086
        %v2267 = vpack.c.b16 %v2091, %v2087
        %v2268 = vpack.c.b16 %v2092, %v2088
        %v2269 = vpack.c.b16 %v2093, %v2089
        %v2270 = vpack.c.b16 %v2098, %v2094
        %v2271 = vpack.c.b16 %v2099, %v2095
        %v2272 = vpack.c.b16 %v2100, %v2096
        %v2273 = vpack.c.b16 %v2101, %v2097
        %v2274 = vpack.c.b16 %v2106, %v2102
        %v2275 = vpack.c.b16 %v2107, %v2103
        %v2276 = vpack.c.b16 %v2108, %v2104
        %v2277 = vpack.c.b16 %v2109, %v2105
        %v2278 = vpack.c.b16 %v2114, %v2110
        %v2279 = vpack.c.b16 %v2115, %v2111
        %v2280 = vpack.c.b16 %v2116, %v2112
        %v2281 = vpack.c.b16 %v2117, %v2113
        %v2282 = vpack.c.b16 %v2122, %v2118
        %v2283 = vpack.c.b16 %v2123, %v2119
        %v2284 = vpack.c.b16 %v2124, %v2120
        %v2285 = vpack.c.b16 %v2125, %v2121
        %v2286 = vpack.c.b16 %v2130, %v2126
        %v2287 = vpack.c.b16 %v2131, %v2127
        %v2288 = vpack.c.b16 %v2132, %v2128
        %v2289 = vpack.c.b16 %v2133, %v2129
        %v2290 = vpack.c.b16 %v2138, %v2134
        %v2291 = vpack.c.b16 %v2139, %v2135
        %v2292 = vpack.c.b16 %v2140, %v2136
        %v2293 = vpack.c.b16 %v2141, %v2137
        %v2294 = vpack.c.b16 %v2146, %v2142
        %v2295 = vpack.c.b16 %v2147, %v2143
        %v2296 = vpack.c.b16 %v2148, %v2144
        %v2297 = vpack.c.b16 %v2149, %v2145
        %v2298 = vpack.c.b16 %v2154, %v2150
        %v2299 = vpack.c.b16 %v2155, %v2151
        %v2300 = vpack.c.b16 %v2156, %v2152
        %v2301 = vpack.c.b16 %v2157, %v2153
        %v2302 = vpack.c.b16 %v2162, %v2158
        %v2303 = vpack.c.b16 %v2163, %v2159
        %v2304 = vpack.c.b16 %v2164, %v2160
        %v2305 = vpack.c.b16 %v2165, %v2161
        %v2306 = vpack.c.b16 %v2170, %v2166
        %v2307 = vpack.c.b16 %v2171, %v2167
        %v2308 = vpack.c.b16 %v2172, %v2168
        %v2309 = vpack.c.b16 %v2173, %v2169
        %v2310 = vpack.c.b16 %v2178, %v2174
        %v2311 = vpack.c.b16 %v2179, %v2175
        %v2312 = vpack.c.b16 %v2180, %v2176
        %v2313 = vpack.c.b16 %v2181, %v2177
        %v2314 = vpack.c.b16 %v2186, %v2182
        %v2315 = vpack.c.b16 %v2187, %v2183
        %v2316 = vpack.c.b16 %v2188, %v2184
        %v2317 = vpack.c.b16 %v2189, %v2185
        %2446 = vmatprep.subr.bf16.mxu0 %v2191
        %2447 = vmatpush1.bf16.msra.mxu0 %v2190
        %2448 = vmatprep.subr.bf16.mxu0 %v2195
        %2449 = vmatpush1.bf16.msra.mxu0 %v2194
        %2450 = vmatprep.subr.bf16.mxu0 %v2199
        %2451 = vmatpush1.bf16.msra.mxu0 %v2198
        %2452 = vmatprep.subr.bf16.mxu0 %v2203
        %2453 = vmatpush1.bf16.msra.mxu0 %v2202
        %2454 = vmatprep.subr.bf16.mxu0 %v2207
        %2455 = vmatpush1.bf16.msra.mxu0 %v2206
        %2456 = vmatprep.subr.bf16.mxu0 %v2211
        %2457 = vmatpush1.bf16.msra.mxu0 %v2210
        %2458 = vmatprep.subr.bf16.mxu0 %v2215
        %2459 = vmatpush1.bf16.msra.mxu0 %v2214
        %2460 = vmatprep.subr.bf16.mxu0 %v2219
        %2461 = vmatpush1.bf16.msra.mxu0 %v2218
        %2462 = vmatprep.subr.bf16.mxu0 %v2223
        %2463 = vmatpush1.bf16.msra.mxu0 %v2222
        %2464 = vmatprep.subr.bf16.mxu0 %v2227
        %2465 = vmatpush1.bf16.msra.mxu0 %v2226
        %2466 = vmatprep.subr.bf16.mxu0 %v2231
        %2467 = vmatpush1.bf16.msra.mxu0 %v2230
        %2468 = vmatprep.subr.bf16.mxu0 %v2235
        %2469 = vmatpush1.bf16.msra.mxu0 %v2234
        %2470 = vmatprep.subr.bf16.mxu0 %v2239
        %2471 = vmatpush1.bf16.msra.mxu0 %v2238
        %2472 = vmatprep.subr.bf16.mxu0 %v2243
        %2473 = vmatpush1.bf16.msra.mxu0 %v2242
        %2474 = vmatprep.subr.bf16.mxu0 %v2247
        %2475 = vmatpush1.bf16.msra.mxu0 %v2246
        %2476 = vmatprep.subr.bf16.mxu0 %v2251
        %2477 = vmatpush1.bf16.msra.mxu0 %v2250
        %2478 = vmatprep.mubr.bf16.mxu0 %v1653
        %2479 = vmatmul.mubr.bf16.gmra.mrb[0].mxu0 %v1652
        %v2480 = vpop.f32.mrb[0].mxu0
        %v2481 = vadd.f32 %v1789, %v2480
        %v2482 = vpop.f32.mrb[0].mxu0
        %v2483 = vadd.f32 %v1793, %v2482
        %v2484 = vpop.f32.mrb[0].mxu0
        %v2485 = vpop.f32.mrb[0].mxu0
        %2486 = vdwg.mxu0
        %2487 = vmatprep.subr.bf16.mxu0 %v2255
        %2488 = vmatpush1.bf16.msra.mxu0 %v2254
        %2489 = vmatprep.subr.bf16.mxu0 %v2259
        %2490 = vmatpush1.bf16.msra.mxu0 %v2258
        %2491 = vmatprep.subr.bf16.mxu0 %v2263
        %2492 = vmatpush1.bf16.msra.mxu0 %v2262
        %2493 = vmatprep.subr.bf16.mxu0 %v2267
        %2494 = vmatpush1.bf16.msra.mxu0 %v2266
        %2495 = vmatprep.subr.bf16.mxu0 %v2271
        %2496 = vmatpush1.bf16.msra.mxu0 %v2270
        %2497 = vmatprep.subr.bf16.mxu0 %v2275
        %2498 = vmatpush1.bf16.msra.mxu0 %v2274
        %2499 = vmatprep.subr.bf16.mxu0 %v2279
        %2500 = vmatpush1.bf16.msra.mxu0 %v2278
        %2501 = vmatprep.subr.bf16.mxu0 %v2283
        %2502 = vmatpush1.bf16.msra.mxu0 %v2282
        %2503 = vmatprep.subr.bf16.mxu0 %v2287
        %2504 = vmatpush1.bf16.msra.mxu0 %v2286
        %2505 = vmatprep.subr.bf16.mxu0 %v2291
        %2506 = vmatpush1.bf16.msra.mxu0 %v2290
        %2507 = vmatprep.subr.bf16.mxu0 %v2295
        %2508 = vmatpush1.bf16.msra.mxu0 %v2294
        %2509 = vmatprep.subr.bf16.mxu0 %v2299
        %2510 = vmatpush1.bf16.msra.mxu0 %v2298
        %2511 = vmatprep.subr.bf16.mxu0 %v2303
        %2512 = vmatpush1.bf16.msra.mxu0 %v2302
        %2513 = vmatprep.subr.bf16.mxu0 %v2307
        %2514 = vmatpush1.bf16.msra.mxu0 %v2306
        %2515 = vmatprep.subr.bf16.mxu0 %v2311
        %2516 = vmatpush1.bf16.msra.mxu0 %v2310
        %2517 = vmatprep.subr.bf16.mxu0 %v2315
        %2518 = vmatpush1.bf16.msra.mxu0 %v2314
        %2519 = vmatprep.mubr.bf16.mxu0 %v1655
        %2520 = vmatmul.mubr.bf16.gmra.mrb[0].mxu0 %v1654
        %v2521 = vpop.f32.mrb[0].mxu0
        %v2522 = vadd.f32 %v2481, %v2521
        %v2523 = vpop.f32.mrb[0].mxu0
        %v2524 = vadd.f32 %v2483, %v2523
        %v2525 = vpop.f32.mrb[0].mxu0
        %v2526 = vpop.f32.mrb[0].mxu0
        %2527 = vdwg.mxu0
        %2528 = vmatprep.subr.bf16.mxu0 %v2193
        %2529 = vmatpush1.bf16.msra.mxu0 %v2192
        %2530 = vmatprep.subr.bf16.mxu0 %v2197
        %2531 = vmatpush1.bf16.msra.mxu0 %v2196
        %2532 = vmatprep.subr.bf16.mxu0 %v2201
        %2533 = vmatpush1.bf16.msra.mxu0 %v2200
        %2534 = vmatprep.subr.bf16.mxu0 %v2205
        %2535 = vmatpush1.bf16.msra.mxu0 %v2204
        %2536 = vmatprep.subr.bf16.mxu0 %v2209
        %2537 = vmatpush1.bf16.msra.mxu0 %v2208
        %2538 = vmatprep.subr.bf16.mxu0 %v2213
        %2539 = vmatpush1.bf16.msra.mxu0 %v2212
        %2540 = vmatprep.subr.bf16.mxu0 %v2217
        %2541 = vmatpush1.bf16.msra.mxu0 %v2216
        %2542 = vmatprep.subr.bf16.mxu0 %v2221
        %2543 = vmatpush1.bf16.msra.mxu0 %v2220
        %2544 = vmatprep.subr.bf16.mxu0 %v2225
        %2545 = vmatpush1.bf16.msra.mxu0 %v2224
        %2546 = vmatprep.subr.bf16.mxu0 %v2229
        %2547 = vmatpush1.bf16.msra.mxu0 %v2228
        %2548 = vmatprep.subr.bf16.mxu0 %v2233
        %2549 = vmatpush1.bf16.msra.mxu0 %v2232
        %2550 = vmatprep.subr.bf16.mxu0 %v2237
        %2551 = vmatpush1.bf16.msra.mxu0 %v2236
        %2552 = vmatprep.subr.bf16.mxu0 %v2241
        %2553 = vmatpush1.bf16.msra.mxu0 %v2240
        %2554 = vmatprep.subr.bf16.mxu0 %v2245
        %2555 = vmatpush1.bf16.msra.mxu0 %v2244
        %2556 = vmatprep.subr.bf16.mxu0 %v2249
        %2557 = vmatpush1.bf16.msra.mxu0 %v2248
        %2558 = vmatprep.subr.bf16.mxu0 %v2253
        %2559 = vmatpush1.bf16.msra.mxu0 %v2252
        %2560 = vmatprep.mubr.bf16.mxu0 %v1653
        %2561 = vmatmul.mubr.bf16.gmra.mrb[0].mxu0 %v1652
        %v2562 = vpop.f32.mrb[0].mxu0
        %v2563 = vadd.f32 %v1797, %v2562
        %v2564 = vpop.f32.mrb[0].mxu0
        %v2565 = vadd.f32 %v1801, %v2564
        %v2566 = vpop.f32.mrb[0].mxu0
        %v2567 = vpop.f32.mrb[0].mxu0
        %2568 = vdwg.mxu0
        %2569 = vmatprep.subr.bf16.mxu0 %v2257
        %2570 = vmatpush1.bf16.msra.mxu0 %v2256
        %2571 = vmatprep.subr.bf16.mxu0 %v2261
        %2572 = vmatpush1.bf16.msra.mxu0 %v2260
        %2573 = vmatprep.subr.bf16.mxu0 %v2265
        %2574 = vmatpush1.bf16.msra.mxu0 %v2264
        %2575 = vmatprep.subr.bf16.mxu0 %v2269
        %2576 = vmatpush1.bf16.msra.mxu0 %v2268
        %2577 = vmatprep.subr.bf16.mxu0 %v2273
        %2578 = vmatpush1.bf16.msra.mxu0 %v2272
        %2579 = vmatprep.subr.bf16.mxu0 %v2277
        %2580 = vmatpush1.bf16.msra.mxu0 %v2276
        %2581 = vmatprep.subr.bf16.mxu0 %v2281
        %2582 = vmatpush1.bf16.msra.mxu0 %v2280
        %2583 = vmatprep.subr.bf16.mxu0 %v2285
        %2584 = vmatpush1.bf16.msra.mxu0 %v2284
        %2585 = vmatprep.subr.bf16.mxu0 %v2289
        %2586 = vmatpush1.bf16.msra.mxu0 %v2288
        %2587 = vmatprep.subr.bf16.mxu0 %v2293
        %2588 = vmatpush1.bf16.msra.mxu0 %v2292
        %2589 = vmatprep.subr.bf16.mxu0 %v2297
        %2590 = vmatpush1.bf16.msra.mxu0 %v2296
        %2591 = vmatprep.subr.bf16.mxu0 %v2301
        %2592 = vmatpush1.bf16.msra.mxu0 %v2300
        %2593 = vmatprep.subr.bf16.mxu0 %v2305
        %2594 = vmatpush1.bf16.msra.mxu0 %v2304
        %2595 = vmatprep.subr.bf16.mxu0 %v2309
        %2596 = vmatpush1.bf16.msra.mxu0 %v2308
        %2597 = vmatprep.subr.bf16.mxu0 %v2313
        %2598 = vmatpush1.bf16.msra.mxu0 %v2312
        %2599 = vmatprep.subr.bf16.mxu0 %v2317
        %2600 = vmatpush1.bf16.msra.mxu0 %v2316
        %2601 = vmatprep.mubr.bf16.mxu0 %v1655
        %2602 = vmatmul.mubr.bf16.gmra.mrb[0].mxu0 %v1654
        %v2603 = vpop.f32.mrb[0].mxu0
        %v2604 = vadd.f32 %v2563, %v2603
        %v2605 = vpop.f32.mrb[0].mxu0
        %v2606 = vadd.f32 %v2565, %v2605
        %v2607 = vpop.f32.mrb[0].mxu0
        %v2608 = vpop.f32.mrb[0].mxu0
        %2609 = vdwg.mxu0
        %v2610 = vmax.f32 %v2522, 0.0
        %v2611 = vmax.f32 %v2524, 0.0
        %v2612 = vmax.f32 %v2604, 0.0
        %v2613 = vmax.f32 %v2606, 0.0
        %v2614 = vpack.c.bf16 %v2610, %v2610
        %v2615 = vpack.c.bf16 %v2611, %v2611
        %v2616 = vpack.c.bf16 %v2612, %v2612
        %v2617 = vpack.c.bf16 %v2613, %v2613
        %v2618 = vld [vmem:[%s523] sm:$0xf]
        %v2619 = vld [vmem:[%s523 + $0x4] sm:$0xf]
        %v2620 = vld [vmem:[%s523 + $0x8] sm:$0xf]
        %v2621 = vld [vmem:[%s523 + $0xc] sm:$0xf]
        %v2622 = vld [vmem:[%s523 + $0x10] sm:$0xf]
        %v2623 = vld [vmem:[%s523 + $0x14] sm:$0xf]
        %v2624 = vld [vmem:[%s523 + $0x18] sm:$0xf]
        %v2625 = vld [vmem:[%s523 + $0x1c] sm:$0xf]
        %v2626 = vld [vmem:[%s523 + $0x20] sm:$0xf]
        %v2627 = vld [vmem:[%s523 + $0x24] sm:$0xf]
        %v2628 = vld [vmem:[%s523 + $0x28] sm:$0xf]
        %v2629 = vld [vmem:[%s523 + $0x2c] sm:$0xf]
        %v2630 = vld [vmem:[%s523 + $0x30] sm:$0xf]
        %v2631 = vld [vmem:[%s523 + $0x34] sm:$0xf]
        %v2632 = vld [vmem:[%s523 + $0x38] sm:$0xf]
        %v2633 = vld [vmem:[%s523 + $0x3c] sm:$0xf]
        %v2634 = vld [vmem:[%s523 + $0x40] sm:$0xf]
        %v2635 = vld [vmem:[%s523 + $0x44] sm:$0xf]
        %v2636 = vld [vmem:[%s523 + $0x48] sm:$0xf]
        %v2637 = vld [vmem:[%s523 + $0x4c] sm:$0xf]
        %v2638 = vld [vmem:[%s523 + $0x50] sm:$0xf]
        %v2639 = vld [vmem:[%s523 + $0x54] sm:$0xf]
        %v2640 = vld [vmem:[%s523 + $0x58] sm:$0xf]
        %v2641 = vld [vmem:[%s523 + $0x5c] sm:$0xf]
        %v2642 = vld [vmem:[%s523 + $0x60] sm:$0xf]
        %v2643 = vld [vmem:[%s523 + $0x64] sm:$0xf]
        %v2644 = vld [vmem:[%s523 + $0x68] sm:$0xf]
        %v2645 = vld [vmem:[%s523 + $0x6c] sm:$0xf]
        %v2646 = vld [vmem:[%s523 + $0x70] sm:$0xf]
        %v2647 = vld [vmem:[%s523 + $0x74] sm:$0xf]
        %v2648 = vld [vmem:[%s523 + $0x78] sm:$0xf]
        %v2649 = vld [vmem:[%s523 + $0x7c] sm:$0xf]
        %v2650 = vld [vmem:[%s523 + $0x80] sm:$0xf]
        %v2651 = vld [vmem:[%s523 + $0x84] sm:$0xf]
        %v2652 = vld [vmem:[%s523 + $0x88] sm:$0xf]
        %v2653 = vld [vmem:[%s523 + $0x8c] sm:$0xf]
        %v2654 = vld [vmem:[%s523 + $0x90] sm:$0xf]
        %v2655 = vld [vmem:[%s523 + $0x94] sm:$0xf]
        %v2656 = vld [vmem:[%s523 + $0x98] sm:$0xf]
        %v2657 = vld [vmem:[%s523 + $0x9c] sm:$0xf]
        %v2658 = vld [vmem:[%s523 + $0xa0] sm:$0xf]
        %v2659 = vld [vmem:[%s523 + $0xa4] sm:$0xf]
        %v2660 = vld [vmem:[%s523 + $0xa8] sm:$0xf]
        %v2661 = vld [vmem:[%s523 + $0xac] sm:$0xf]
        %v2662 = vld [vmem:[%s523 + $0xb0] sm:$0xf]
        %v2663 = vld [vmem:[%s523 + $0xb4] sm:$0xf]
        %v2664 = vld [vmem:[%s523 + $0xb8] sm:$0xf]
        %v2665 = vld [vmem:[%s523 + $0xbc] sm:$0xf]
        %v2666 = vld [vmem:[%s523 + $0xc0] sm:$0xf]
        %v2667 = vld [vmem:[%s523 + $0xc4] sm:$0xf]
        %v2668 = vld [vmem:[%s523 + $0xc8] sm:$0xf]
        %v2669 = vld [vmem:[%s523 + $0xcc] sm:$0xf]
        %v2670 = vld [vmem:[%s523 + $0xd0] sm:$0xf]
        %v2671 = vld [vmem:[%s523 + $0xd4] sm:$0xf]
        %v2672 = vld [vmem:[%s523 + $0xd8] sm:$0xf]
        %v2673 = vld [vmem:[%s523 + $0xdc] sm:$0xf]
        %v2674 = vld [vmem:[%s523 + $0xe0] sm:$0xf]
        %v2675 = vld [vmem:[%s523 + $0xe4] sm:$0xf]
        %v2676 = vld [vmem:[%s523 + $0xe8] sm:$0xf]
        %v2677 = vld [vmem:[%s523 + $0xec] sm:$0xf]
        %v2678 = vld [vmem:[%s523 + $0xf0] sm:$0xf]
        %v2679 = vld [vmem:[%s523 + $0xf4] sm:$0xf]
        %v2680 = vld [vmem:[%s523 + $0xf8] sm:$0xf]
        %v2681 = vld [vmem:[%s523 + $0xfc] sm:$0xf]
        %v2682 = vld [vmem:[%s526] sm:$0x1]
        %v2684 = vlaneseq
        %v2685 = vshrl.u32 %v2684, 7
        %v2686 = vsub.s32 0, %v2685
        %v2687 = vrot.slane %v2682, %v2686
        %v2753 = vunpack.c.l.b16 %v2618
        %v2754 = vunpack.c.l.b16 %v2619
        %v2755 = vunpack.c.l.b16 %v2620
        %v2756 = vunpack.c.l.b16 %v2621
        %v2757 = vunpack.c.l.b16 %v2622
        %v2758 = vunpack.c.l.b16 %v2623
        %v2759 = vunpack.c.l.b16 %v2624
        %v2760 = vunpack.c.l.b16 %v2625
        %v2761 = vunpack.c.l.b16 %v2626
        %v2762 = vunpack.c.l.b16 %v2627
        %v2763 = vunpack.c.l.b16 %v2628
        %v2764 = vunpack.c.l.b16 %v2629
        %v2765 = vunpack.c.l.b16 %v2630
        %v2766 = vunpack.c.l.b16 %v2631
        %v2767 = vunpack.c.l.b16 %v2632
        %v2768 = vunpack.c.l.b16 %v2633
        %v2769 = vunpack.c.l.b16 %v2634
        %v2770 = vunpack.c.l.b16 %v2635
        %v2771 = vunpack.c.l.b16 %v2636
        %v2772 = vunpack.c.l.b16 %v2637
        %v2773 = vunpack.c.l.b16 %v2638
        %v2774 = vunpack.c.l.b16 %v2639
        %v2775 = vunpack.c.l.b16 %v2640
        %v2776 = vunpack.c.l.b16 %v2641
        %v2777 = vunpack.c.l.b16 %v2642
        %v2778 = vunpack.c.l.b16 %v2643
        %v2779 = vunpack.c.l.b16 %v2644
        %v2780 = vunpack.c.l.b16 %v2645
        %v2781 = vunpack.c.l.b16 %v2646
        %v2782 = vunpack.c.l.b16 %v2647
        %v2783 = vunpack.c.l.b16 %v2648
        %v2784 = vunpack.c.l.b16 %v2649
        %v2785 = vunpack.c.l.b16 %v2650
        %v2786 = vunpack.c.l.b16 %v2651
        %v2787 = vunpack.c.l.b16 %v2652
        %v2788 = vunpack.c.l.b16 %v2653
        %v2789 = vunpack.c.l.b16 %v2654
        %v2790 = vunpack.c.l.b16 %v2655
        %v2791 = vunpack.c.l.b16 %v2656
        %v2792 = vunpack.c.l.b16 %v2657
        %v2793 = vunpack.c.l.b16 %v2658
        %v2794 = vunpack.c.l.b16 %v2659
        %v2795 = vunpack.c.l.b16 %v2660
        %v2796 = vunpack.c.l.b16 %v2661
        %v2797 = vunpack.c.l.b16 %v2662
        %v2798 = vunpack.c.l.b16 %v2663
        %v2799 = vunpack.c.l.b16 %v2664
        %v2800 = vunpack.c.l.b16 %v2665
        %v2801 = vunpack.c.l.b16 %v2666
        %v2802 = vunpack.c.l.b16 %v2667
        %v2803 = vunpack.c.l.b16 %v2668
        %v2804 = vunpack.c.l.b16 %v2669
        %v2805 = vunpack.c.l.b16 %v2670
        %v2806 = vunpack.c.l.b16 %v2671
        %v2807 = vunpack.c.l.b16 %v2672
        %v2808 = vunpack.c.l.b16 %v2673
        %v2809 = vunpack.c.l.b16 %v2674
        %v2810 = vunpack.c.l.b16 %v2675
        %v2811 = vunpack.c.l.b16 %v2676
        %v2812 = vunpack.c.l.b16 %v2677
        %v2813 = vunpack.c.l.b16 %v2678
        %v2814 = vunpack.c.l.b16 %v2679
        %v2815 = vunpack.c.l.b16 %v2680
        %v2816 = vunpack.c.l.b16 %v2681
        %v2817 = vpack.c.b16 %v2754, %v2753
        %v2818 = vpack.c.b16 %v2756, %v2755
        %v2819 = vpack.c.b16 %v2758, %v2757
        %v2820 = vpack.c.b16 %v2760, %v2759
        %v2821 = vpack.c.b16 %v2762, %v2761
        %v2822 = vpack.c.b16 %v2764, %v2763
        %v2823 = vpack.c.b16 %v2766, %v2765
        %v2824 = vpack.c.b16 %v2768, %v2767
        %v2825 = vpack.c.b16 %v2770, %v2769
        %v2826 = vpack.c.b16 %v2772, %v2771
        %v2827 = vpack.c.b16 %v2774, %v2773
        %v2828 = vpack.c.b16 %v2776, %v2775
        %v2829 = vpack.c.b16 %v2778, %v2777
        %v2830 = vpack.c.b16 %v2780, %v2779
        %v2831 = vpack.c.b16 %v2782, %v2781
        %v2832 = vpack.c.b16 %v2784, %v2783
        %v2833 = vpack.c.b16 %v2786, %v2785
        %v2834 = vpack.c.b16 %v2788, %v2787
        %v2835 = vpack.c.b16 %v2790, %v2789
        %v2836 = vpack.c.b16 %v2792, %v2791
        %v2837 = vpack.c.b16 %v2794, %v2793
        %v2838 = vpack.c.b16 %v2796, %v2795
        %v2839 = vpack.c.b16 %v2798, %v2797
        %v2840 = vpack.c.b16 %v2800, %v2799
        %v2841 = vpack.c.b16 %v2802, %v2801
        %v2842 = vpack.c.b16 %v2804, %v2803
        %v2843 = vpack.c.b16 %v2806, %v2805
        %v2844 = vpack.c.b16 %v2808, %v2807
        %v2845 = vpack.c.b16 %v2810, %v2809
        %v2846 = vpack.c.b16 %v2812, %v2811
        %v2847 = vpack.c.b16 %v2814, %v2813
        %v2848 = vpack.c.b16 %v2816, %v2815
        %2881 = vmatprep.subr.bf16.mxu0 0
        %2882 = vmatpush1.bf16.msra.mxu0 %v2817
        %2883 = vmatprep.subr.bf16.mxu0 0
        %2884 = vmatpush1.bf16.msra.mxu0 %v2818
        %2885 = vmatprep.subr.bf16.mxu0 0
        %2886 = vmatpush1.bf16.msra.mxu0 %v2819
        %2887 = vmatprep.subr.bf16.mxu0 0
        %2888 = vmatpush1.bf16.msra.mxu0 %v2820
        %2889 = vmatprep.subr.bf16.mxu0 0
        %2890 = vmatpush1.bf16.msra.mxu0 %v2821
        %2891 = vmatprep.subr.bf16.mxu0 0
        %2892 = vmatpush1.bf16.msra.mxu0 %v2822
        %2893 = vmatprep.subr.bf16.mxu0 0
        %2894 = vmatpush1.bf16.msra.mxu0 %v2823
        %2895 = vmatprep.subr.bf16.mxu0 0
        %2896 = vmatpush1.bf16.msra.mxu0 %v2824
        %2897 = vmatprep.subr.bf16.mxu0 0
        %2898 = vmatpush1.bf16.msra.mxu0 %v2825
        %2899 = vmatprep.subr.bf16.mxu0 0
        %2900 = vmatpush1.bf16.msra.mxu0 %v2826
        %2901 = vmatprep.subr.bf16.mxu0 0
        %2902 = vmatpush1.bf16.msra.mxu0 %v2827
        %2903 = vmatprep.subr.bf16.mxu0 0
        %2904 = vmatpush1.bf16.msra.mxu0 %v2828
        %2905 = vmatprep.subr.bf16.mxu0 0
        %2906 = vmatpush1.bf16.msra.mxu0 %v2829
        %2907 = vmatprep.subr.bf16.mxu0 0
        %2908 = vmatpush1.bf16.msra.mxu0 %v2830
        %2909 = vmatprep.subr.bf16.mxu0 0
        %2910 = vmatpush1.bf16.msra.mxu0 %v2831
        %2911 = vmatprep.subr.bf16.mxu0 0
        %2912 = vmatpush1.bf16.msra.mxu0 %v2832
        %2913 = vmatprep.mubr.bf16.mxu0 %v2615
        %2914 = vmatmul.mubr.bf16.gmra.mrb[0].mxu0 %v2614
        %v2915 = vpop.f32.mrb[0].mxu0
        %v2916 = vadd.f32 %v2687, %v2915
        %v2917 = vpop.f32.mrb[0].mxu0
        %v2918 = vpop.f32.mrb[0].mxu0
        %v2919 = vpop.f32.mrb[0].mxu0
        %2920 = vdwg.mxu0
        %2921 = vmatprep.subr.bf16.mxu0 0
        %2922 = vmatpush1.bf16.msra.mxu0 %v2833
        %2923 = vmatprep.subr.bf16.mxu0 0
        %2924 = vmatpush1.bf16.msra.mxu0 %v2834
        %2925 = vmatprep.subr.bf16.mxu0 0
        %2926 = vmatpush1.bf16.msra.mxu0 %v2835
        %2927 = vmatprep.subr.bf16.mxu0 0
        %2928 = vmatpush1.bf16.msra.mxu0 %v2836
        %2929 = vmatprep.subr.bf16.mxu0 0
        %2930 = vmatpush1.bf16.msra.mxu0 %v2837
        %2931 = vmatprep.subr.bf16.mxu0 0
        %2932 = vmatpush1.bf16.msra.mxu0 %v2838
        %2933 = vmatprep.subr.bf16.mxu0 0
        %2934 = vmatpush1.bf16.msra.mxu0 %v2839
        %2935 = vmatprep.subr.bf16.mxu0 0
        %2936 = vmatpush1.bf16.msra.mxu0 %v2840
        %2937 = vmatprep.subr.bf16.mxu0 0
        %2938 = vmatpush1.bf16.msra.mxu0 %v2841
        %2939 = vmatprep.subr.bf16.mxu0 0
        %2940 = vmatpush1.bf16.msra.mxu0 %v2842
        %2941 = vmatprep.subr.bf16.mxu0 0
        %2942 = vmatpush1.bf16.msra.mxu0 %v2843
        %2943 = vmatprep.subr.bf16.mxu0 0
        %2944 = vmatpush1.bf16.msra.mxu0 %v2844
        %2945 = vmatprep.subr.bf16.mxu0 0
        %2946 = vmatpush1.bf16.msra.mxu0 %v2845
        %2947 = vmatprep.subr.bf16.mxu0 0
        %2948 = vmatpush1.bf16.msra.mxu0 %v2846
        %2949 = vmatprep.subr.bf16.mxu0 0
        %2950 = vmatpush1.bf16.msra.mxu0 %v2847
        %2951 = vmatprep.subr.bf16.mxu0 0
        %2952 = vmatpush1.bf16.msra.mxu0 %v2848
        %2953 = vmatprep.mubr.bf16.mxu0 %v2617
        %2954 = vmatmul.mubr.bf16.gmra.mrb[0].mxu0 %v2616
        %v2955 = vpop.f32.mrb[0].mxu0
        %v2956 = vadd.f32 %v2916, %v2955
        %v2957 = vpop.f32.mrb[0].mxu0
        %v2958 = vpop.f32.mrb[0].mxu0
        %v2959 = vpop.f32.mrb[0].mxu0
        %2960 = vdwg.mxu0
        %vm2961 = vcmask 203776
        %2962 = vst.msk [vmem:[%s497] sm:$0xff] %vm2961, %v2956
        %s2963 = sand.u32 %s285, 1
        %s2964 = scalar_lea.sflag [#allocation4], %s2963
        %s2965 = sand.u32 %s285, 1
        %s2966 = smul.addr %s2965, 8
        %s2967 = scalar_lea.vmem [#allocation7], %s2966
        // Predicated region
        $region65: #{tpu_custom_call.1} parent=55 // pred_check
          %p2968 = pneg %p295
        $region66: #{tpu_custom_call.1} parent=55 // pred_check_branch
          %2970 = sbr.rel (%p2968) target = $region68
        $region67: #{tpu_custom_call.1} parent=55 // pred_region
          %s2972 = ssub.s32 128, 128
          %2973 = vsyncadd %s2964, %s2972
          %s2974 = sadd.s32 %s34, %s33
          %s2975 = smul.addr %s2974, 128
          %s2976 = scalar_lea.hbm %s9, %s2975
          %s2978 = sshll.u32 %s2967, 4
          %s2979 = int_to_ptr.vmem [resolvable:$true] %s2978
          %2981 = dma.vmem_to_hbm [thread:$0]  %s2979, 128, %s2976, %s2964
        $region68: #{tpu_custom_call.1} parent=55 // pred_fallthru
          _
      $region56: #{tpu_custom_call.1} parent=5 // pred_fallthru
        _
      %p2982 = scmp.le.s32.totalorder 2, %s24
      // Predicated region
      $region69: #{tpu_custom_call.1} parent=5 // pred_check
        %p2983 = pneg %p2982
      $region70: #{tpu_custom_call.1} parent=5 // pred_check_branch
        %2985 = sbr.rel (%p2983) target = $region72
      $region71: #{tpu_custom_call.1} parent=5 // pred_region
        %s2986 = ssub.s32 %s24, 2
        // Predicated region
        $region73: #{tpu_custom_call.1} parent=71 // pred_check
          %p2987 = pneg %p301
        $region74: #{tpu_custom_call.1} parent=71 // pred_check_branch
          %2989 = sbr.rel (%p2987) target = $region76
        $region75: #{tpu_custom_call.1} parent=71 // pred_region
          %s2990 = sand.u32 %s286, 1
          %s2991 = scalar_lea.sflag [#allocation4], %s2990
          %s2992 = sand.u32 %s286, 1
          %s2993 = smul.addr %s2992, 8
          %s2994 = scalar_lea.vmem [#allocation7], %s2993
          %2995 = dma.done %s2991, 128
        $region76: #{tpu_custom_call.1} parent=71 // pred_fallthru
          _
      $region72: #{tpu_custom_call.1} parent=5 // pred_fallthru
        _
    $region6: #{tpu_custom_call.1} parent=1 // loop_footer
      %s28 = sadd.s32 1, %s24
    $region7: #{tpu_custom_call.1} parent=1 // loop_footer_branch
      %23 = sbr.rel target = $region3
    $region8: #{tpu_custom_call.1} parent=1 // loop_exit
      _
    %2996 = vsyncpa [#allocation3], 1
    %s2997 = scalar_lea.sflag [#allocation3], 1
    %2998 = vsyncpa %s2997, 1
    %2999 = vsyncpa [#allocation6], 1
    %s3000 = scalar_lea.sflag [#allocation6], 1
    %3001 = vsyncpa %s3000, 1
    %3002 = vsyncpa [#allocation4], 1
    %s3003 = scalar_lea.sflag [#allocation4], 1
    %3004 = vsyncpa %s3003, 1

</llo_original>
